<compile_context>
chip_gen: v7x
topology: tpu7x:2x2x1
jax: 0.10.0
libtpu: 0.0.40
codegen_flags: <defaults>
</compile_context>

<pallas_src>
import functools
import math

import jax
import jax.numpy as jnp
from jax import lax
from jax.experimental import pallas as pl
from jax.experimental.pallas import tpu as pltpu


def _round_up(x, m):
    return (x + m - 1) // m * m


def _pick_row_tile(H, W, max_lanes=2048):
    """Largest Ht dividing H with Ht*W a multiple of 128 and <= max_lanes."""
    best = None
    for ht in range(1, H + 1):
        if H % ht == 0 and (ht * W) % 128 == 0 and ht * W <= max_lanes:
            best = ht
    return best if best is not None else H


def conv_block_kernel(mask_ref, x_ref, w1_ref, b1_ref, w2_ref, b2_ref,
                      wr_ref, br_ref, o_ref, xstk_ref, ystk_ref, *,
                      W, row_tile):
    # mask_ref : (4, 1, TW) f32  [left-col mask, right-col mask, top gate, bot gate]
    # x_ref    : (1, 1, Cin, TW) bf16   halo'd input row tile (TW = R*W)
    # w1_ref   : (Cout, 9*Cin)   bf16   conv1 weights, columns ordered (tap, cin)
    # w2_ref   : (Cout, 9*Cout)  bf16   conv2 weights
    # wr_ref   : (Cout, Cin)     bf16   1x1 residual conv
    # b*_ref   : (Cout, 1)       f32
    # o_ref    : (1, Cout, row_tile*W)  lane-dense output row tile
    # xstk_ref : (9*Cin,  TW) bf16 scratch -- stacked conv1 taps
    # ystk_ref : (9*Cout, TW) bf16 scratch -- stacked conv2 taps
    TW = x_ref.shape[-1]
    Cin = x_ref.shape[-2]
    Cout = o_ref.shape[1]

    x_bf = x_ref[0, 0]                          # (Cin, TW) bf16
    # 32-bit rotate path for the tap shifts (known-good lowering); the per-tap
    # bf16 cast is fused into the scratch store feeding the MXU.
    x32 = x_bf.astype(jnp.float32)

    col_mask = (mask_ref[0], None, mask_ref[1])  # per-dx column validity, (1, TW)

    def stack_taps(a32, stk_ref, c):
        # Write the 9 shifted (+column-masked) taps of a (c, TW) f32 tile into
        # stk_ref rows [t*c, (t+1)*c) as bf16, so the whole 3x3 conv becomes
        # ONE K = 9*c MXU matmul instead of 9 skinny ones + a VPU add chain.
        for dy in range(3):
            for dx in range(3):
                t = dy * 3 + dx
                off = (dy - 1) * W + (dx - 1)          # flat spatial offset
                s = a32 if off == 0 else pltpu.roll(a32, (-off) % TW, 1)
                m = col_mask[dx]
                if m is not None:                       # left/right zero padding
                    s = s * m
                stk_ref[pl.ds(t * c, c), :] = s.astype(jnp.bfloat16)

    # ---- conv1 (3x3, pad 1) + bias + LeakyReLU(0.01): one K = 9*Cin matmul --
    stack_taps(x32, xstk_ref, Cin)
    y1 = jnp.dot(w1_ref[...], xstk_ref[...], preferred_element_type=jnp.float32)
    y1 = y1 + b1_ref[...]
    y1 = jnp.maximum(y1, 0.01 * y1)

    # conv2's zero ROW padding: original rows -1 / H live at local rows 1 and
    # row_tile+2 of the first / last tile only -- zero them there so the
    # recomputed conv1 halo is not mistaken for padding.
    t_id = pl.program_id(1)
    gate = jnp.where(t_id == 0, mask_ref[2], 1.0)
    gate = gate * jnp.where(t_id == pl.num_programs(1) - 1, mask_ref[3], 1.0)
    y1 = y1 * gate

    # ---- conv2 (3x3, pad 1) + bias + LeakyReLU(0.01): one K = 9*Cout matmul -
    stack_taps(y1, ystk_ref, Cout)
    y2 = jnp.dot(w2_ref[...], ystk_ref[...], preferred_element_type=jnp.float32)
    y2 = y2 + b2_ref[...]
    y2 = jnp.maximum(y2, 0.01 * y2)

    # ---- 1x1 residual conv on the original input ----------------------------
    res = jnp.dot(wr_ref[...], x_bf, preferred_element_type=jnp.float32)
    res = res + br_ref[...]

    # Keep the row_tile center rows (drop the 2-row halos): rotate the center
    # to lane 0 (XLU slot) and take an aligned prefix instead of an unaligned
    # lane slice, then store lane-dense bf16.
    out = y2 + res
    out = pltpu.roll(out, TW - 2 * W, 1)[:, :row_tile * W]
    o_ref[0] = out.astype(o_ref.dtype)


def conv_block_forward(x_nchw, w1, b1, w2, b2, wr, br, *,
                       row_tile=None, out_dtype=jnp.bfloat16,
                       vmem_limit_bytes=48 * 1024 * 1024):
    """conv_block forward.

    x_nchw : (N, Cin, H, W) f32      (PyTorch NCHW)
    w1 : (Cout, Cin, 3, 3)   b1 : (Cout,)
    w2 : (Cout, Cout, 3, 3)  b2 : (Cout,)
    wr : (Cout, Cin, 1, 1)   br : (Cout,)
    returns (N, Cout, H, W) in `out_dtype` (bf16 by default to halve HBM
    writeback; pass jnp.float32 if the consumer needs it).

    Generation sizing notes (perf review): pick row_tile so the double-buffered
    x/out tiles + the f32 y1/y2 + bf16 tap stacks stay < ~24-28 MiB on v7x
    (64 MiB VMEM/TC), ~2x that on v6e/v5e (raise vmem_limit_bytes there).
    """
    N, Cin, H, W = x_nchw.shape
    Cout = w1.shape[0]
    HW = H * W

    # ---- spatial row tiling (2-row halo recomputed per tile) ---------------
    if row_tile is None:
        row_tile = _pick_row_tile(H, W)
    assert H % row_tile == 0, "row_tile must divide H"
    Ht = row_tile
    nt = H // Ht
    assert nt == 1 or (Ht * W) % 128 == 0, (
        "row_tile*W must be a multiple of 128 when using more than one tile")
    # rows per input tile: >= Ht + 4 halo rows, rounded so the flattened tile
    # width is a multiple of 128 -> lane-aligned rolls and unmasked stores.
    lane_q = 128 // math.gcd(W, 128)
    R = _round_up(Ht + 4, lane_q)
    TW = R * W

    # ---- channel padding to a bf16 sublane tile (no-op for real UNet sizes) -
    Cin_p = _round_up(Cin, 16)
    Cout_p = _round_up(Cout, 16)

    # ---- one-time layout plumbing (all outside the kernel) ------------------
    # zero-pad 2 rows on top (and enough at the bottom for the last tile's
    # halo + lane rounding) -> the conv1 zero padding is real data in the halo.
    pad_bottom = 2 + (R - (Ht + 4))
    xp = jnp.pad(x_nchw.astype(jnp.bfloat16),
                 ((0, 0), (0, Cin_p - Cin), (2, pad_bottom), (0, 0)))
    # overlapping row tiles: tile t covers padded rows [t*Ht, t*Ht + R)
    rows = jnp.arange(nt)[:, None] * Ht + jnp.arange(R)[None, :]       # (nt, R)
    x_unf = xp[:, :, rows, :]                                          # (N,Cin_p,nt,R,W)
    x_unf = jnp.transpose(x_unf, (0, 2, 1, 3, 4)).reshape(N, nt, Cin_p, TW)

    def pad_oi(w, co_p, ci_p):
        return jnp.pad(w, ((0, co_p - w.shape[0]), (0, ci_p - w.shape[1]),
                           (0, 0), (0, 0)))

    # fused-K weights: columns ordered (tap, cin) to match the tap stack rows
    w1_f = jnp.transpose(pad_oi(w1, Cout_p, Cin_p), (0, 2, 3, 1)
                         ).reshape(Cout_p, 9 * Cin_p).astype(jnp.bfloat16)
    w2_f = jnp.transpose(pad_oi(w2, Cout_p, Cout_p), (0, 2, 3, 1)
                         ).reshape(Cout_p, 9 * Cout_p).astype(jnp.bfloat16)
    wr_f = pad_oi(wr, Cout_p, Cin_p).reshape(Cout_p, Cin_p).astype(jnp.bfloat16)
    b1_f = jnp.pad(b1, (0, Cout_p - Cout)).reshape(Cout_p, 1).astype(jnp.float32)
    b2_f = jnp.pad(b2, (0, Cout_p - Cout)).reshape(Cout_p, 1).astype(jnp.float32)
    br_f = jnp.pad(br, (0, Cout_p - Cout)).reshape(Cout_p, 1).astype(jnp.float32)

    # 2 column masks (left/right zero padding) + 2 row gates (conv2's zero row
    # padding at original rows -1 / H, applied only on the first / last tile).
    col = jnp.tile(jnp.arange(W), R)                  # column index per flat lane
    rowi = jnp.repeat(jnp.arange(R), W)               # local row index per lane
    mask_l = (col >= 1).astype(jnp.float32)           # dx=0 taps: source col w-1
    mask_r = (col <= W - 2).astype(jnp.float32)       # dx=2 taps: source col w+1
    gate_top = (rowi != 1).astype(jnp.float32)
    gate_bot = (rowi != Ht + 2).astype(jnp.float32)
    masks = jnp.stack([mask_l, mask_r, gate_top, gate_bot]).reshape(4, 1, TW)

    kernel = functools.partial(conv_block_kernel, W=W, row_tile=Ht)

    flops = 2 * N * HW * (9 * Cin * Cout + 9 * Cout * Cout + Cin * Cout)
    bytes_accessed = int(
        x_unf.size * 2
        + N * Cout_p * HW * jnp.dtype(out_dtype).itemsize
        + (w1_f.size + w2_f.size + wr_f.size) * 2
        + (b1_f.size + b2_f.size + br_f.size + masks.size) * 4)
    cost = pl.CostEstimate(flops=flops, transcendentals=0,
                           bytes_accessed=bytes_accessed)

    out = pl.pallas_call(
        kernel,
        out_shape=jax.ShapeDtypeStruct((N, Cout_p, HW), out_dtype),
        grid_spec=pltpu.PrefetchScalarGridSpec(
            num_scalar_prefetch=0,
            grid=(N, nt),
            in_specs=[
                pl.BlockSpec((4, 1, TW), lambda n, t: (0, 0, 0)),            # masks
                pl.BlockSpec((1, 1, Cin_p, TW), lambda n, t: (n, t, 0, 0)),  # x tiles
                pl.BlockSpec((Cout_p, 9 * Cin_p), lambda n, t: (0, 0)),      # w1
                pl.BlockSpec((Cout_p, 1), lambda n, t: (0, 0)),              # b1
                pl.BlockSpec((Cout_p, 9 * Cout_p), lambda n, t: (0, 0)),     # w2
                pl.BlockSpec((Cout_p, 1), lambda n, t: (0, 0)),              # b2
                pl.BlockSpec((Cout_p, Cin_p), lambda n, t: (0, 0)),          # wr
                pl.BlockSpec((Cout_p, 1), lambda n, t: (0, 0)),              # br
            ],
            out_specs=pl.BlockSpec((1, Cout_p, Ht * W), lambda n, t: (n, 0, t)),
            scratch_shapes=[
                pltpu.VMEM((9 * Cin_p, TW), jnp.bfloat16),    # conv1 tap stack
                pltpu.VMEM((9 * Cout_p, TW), jnp.bfloat16),   # conv2 tap stack
            ],
        ),
        compiler_params=pltpu.CompilerParams(
            dimension_semantics=("parallel", "parallel"),
            vmem_limit_bytes=vmem_limit_bytes),
        cost_estimate=cost,
    )(masks, x_unf, w1_f, b1_f, w2_f, b2_f, wr_f, br_f)

    # drop channel padding; free contiguous reshape back to NCHW
    return out[:, :Cout, :].reshape(N, Cout, H, W)


def reference_forward(x, w1, b1, w2, b2, wr, br):
    """Pure-JAX (XLA conv, f32) reference, identical math to the PyTorch module."""
    dn = ("NCHW", "OIHW", "NCHW")
    y = lax.conv_general_dilated(x, w1, (1, 1), "SAME", dimension_numbers=dn)
    y = y + b1.reshape(1, -1, 1, 1)
    y = jnp.where(y >= 0, y, 0.01 * y)
    y = lax.conv_general_dilated(y, w2, (1, 1), "SAME", dimension_numbers=dn)
    y = y + b2.reshape(1, -1, 1, 1)
    y = jnp.where(y >= 0, y, 0.01 * y)
    r = lax.conv_general_dilated(x, wr, (1, 1), "VALID", dimension_numbers=dn)
    r = r + br.reshape(1, -1, 1, 1)
    return y + r


if __name__ == "__main__":
    # Small deterministic setup: batch=2, in_ch=4, out_ch=8, spatial=16x16.
    N, Cin, Cout, H, W = 2, 4, 8, 16, 16
    key = jax.random.PRNGKey(0)
    kx, k1, k2, k3, k4, k5, k6 = jax.random.split(key, 7)

    x = jax.random.normal(kx, (N, Cin, H, W), jnp.float32)

    # Parameters in PyTorch layout: (Cout, Cin, kH, kW) and (Cout,) biases.
    w1 = 0.1 * jax.random.normal(k1, (Cout, Cin, 3, 3), jnp.float32)
    b1 = 0.1 * jax.random.normal(k2, (Cout,), jnp.float32)
    w2 = 0.1 * jax.random.normal(k3, (Cout, Cout, 3, 3), jnp.float32)
    b2 = 0.1 * jax.random.normal(k4, (Cout,), jnp.float32)
    wr = 0.1 * jax.random.normal(k5, (Cout, Cin, 1, 1), jnp.float32)
    br = 0.1 * jax.random.normal(k6, (Cout,), jnp.float32)

    # row_tile=8 -> 2 row tiles per image: exercises the halo recompute, the
    # interior tile boundary and the first/last-tile zero-padding gates.
    out = jax.block_until_ready(
        conv_block_forward(x, w1, b1, w2, b2, wr, br, row_tile=8))
    ref = jax.block_until_ready(reference_forward(x, w1, b1, w2, b2, wr, br))

    assert out.shape == (N, Cout, H, W)
    out32 = out.astype(jnp.float32)
    max_err = float(jnp.max(jnp.abs(out32 - ref)))
    # bf16 matmul inputs / bf16 output with f32 accumulation vs all-f32 ref.
    assert jnp.allclose(out32, ref, atol=5e-2, rtol=5e-2), (
        f"mismatch vs XLA reference (max abs err {max_err})")

    print("KERNEL_OK")
</pallas_src>

<mosaic_0001>
module attributes {stable_mosaic.version = 11 : i64} {
  func.func @conv_block_kernel(%arg0: i32, %arg1: i32, %arg2: memref<4x1x256xf32, #tpu.memory_space<vmem>>, %arg3: memref<1x1x16x256xbf16, #tpu.memory_space<vmem>>, %arg4: memref<16x144xbf16, #tpu.memory_space<vmem>>, %arg5: memref<16x1xf32, #tpu.memory_space<vmem>>, %arg6: memref<16x144xbf16, #tpu.memory_space<vmem>>, %arg7: memref<16x1xf32, #tpu.memory_space<vmem>>, %arg8: memref<16x16xbf16, #tpu.memory_space<vmem>>, %arg9: memref<16x1xf32, #tpu.memory_space<vmem>>, %arg10: memref<1x16x128xbf16, #tpu.memory_space<vmem>>, %arg11: memref<144x256xbf16, #tpu.memory_space<vmem>>, %arg12: memref<144x256xbf16, #tpu.memory_space<vmem>>) attributes {dimension_semantics = [#tpu.dimension_semantics<parallel>, #tpu.dimension_semantics<parallel>], iteration_bounds = array<i64: 2, 2>, scalar_prefetch = 0 : i64, scratch_operands = 2 : i64, tpu.core_type = #tpu.core_type<tc>, window_params = [{pipeline_mode = #tpu.pipeline_mode<synchronous>, transform_indices = @transform_0, window_bounds = array<i64: 4, 1, 256>}, {transform_indices = @transform_1, window_bounds = array<i64: 1, 1, 16, 256>}, {pipeline_mode = #tpu.pipeline_mode<synchronous>, transform_indices = @transform_2, window_bounds = array<i64: 16, 144>}, {pipeline_mode = #tpu.pipeline_mode<synchronous>, transform_indices = @transform_3, window_bounds = array<i64: 16, 1>}, {pipeline_mode = #tpu.pipeline_mode<synchronous>, transform_indices = @transform_4, window_bounds = array<i64: 16, 144>}, {pipeline_mode = #tpu.pipeline_mode<synchronous>, transform_indices = @transform_5, window_bounds = array<i64: 16, 1>}, {pipeline_mode = #tpu.pipeline_mode<synchronous>, transform_indices = @transform_6, window_bounds = array<i64: 16, 16>}, {pipeline_mode = #tpu.pipeline_mode<synchronous>, transform_indices = @transform_7, window_bounds = array<i64: 16, 1>}, {transform_indices = @transform_8, window_bounds = array<i64: 1, 16, 128>}]} {
    %c0 = arith.constant 0 : index
    %c0_0 = arith.constant 0 : index
    %c0_1 = arith.constant 0 : index
    %c0_2 = arith.constant 0 : index
    %0 = vector.load %arg3[%c0, %c0_0, %c0_1, %c0_2] : memref<1x1x16x256xbf16, #tpu.memory_space<vmem>>, vector<1x1x16x256xbf16>
    %1 = vector.shape_cast %0 : vector<1x1x16x256xbf16> to vector<16x256xbf16>
    %2 = arith.extf %1 : vector<16x256xbf16> to vector<16x256xf32>
    %c0_3 = arith.constant 0 : index
    %c0_4 = arith.constant 0 : index
    %c0_5 = arith.constant 0 : index
    %3 = vector.load %arg2[%c0_3, %c0_4, %c0_5] : memref<4x1x256xf32, #tpu.memory_space<vmem>>, vector<1x1x256xf32>
    %4 = vector.shape_cast %3 : vector<1x1x256xf32> to vector<1x256xf32>
    %c1 = arith.constant 1 : index
    %c0_6 = arith.constant 0 : index
    %c0_7 = arith.constant 0 : index
    %5 = vector.load %arg2[%c1, %c0_6, %c0_7] : memref<4x1x256xf32, #tpu.memory_space<vmem>>, vector<1x1x256xf32>
    %6 = vector.shape_cast %5 : vector<1x1x256xf32> to vector<1x256xf32>
    %c17_i32 = arith.constant 17 : i32
    %7 = tpu.dynamic_rotate %2 by %c17_i32 dim 1 : vector<16x256xf32>, i32 -> vector<16x256xf32>
    %8 = vector.broadcast %4 : vector<1x256xf32> to vector<16x256xf32>
    %9 = arith.mulf %7, %8 : vector<16x256xf32>
    %10 = arith.truncf %9 : vector<16x256xf32> to vector<16x256xbf16>
    %c0_8 = arith.constant 0 : index
    %c0_9 = arith.constant 0 : index
    %11 = vector.load %arg11[%c0_8, %c0_9] : memref<144x256xbf16, #tpu.memory_space<vmem>>, vector<16x256xbf16>
    tpu.vector_store %arg11[%c0_8, %c0_9], %10 {strides = array<i32>} : memref<144x256xbf16, #tpu.memory_space<vmem>>, vector<16x256xbf16>,
    %c16_i32 = arith.constant 16 : i32
    %12 = tpu.dynamic_rotate %2 by %c16_i32 dim 1 : vector<16x256xf32>, i32 -> vector<16x256xf32>
    %13 = arith.truncf %12 : vector<16x256xf32> to vector<16x256xbf16>
    %c16 = arith.constant 16 : index
    %c0_10 = arith.constant 0 : index
    %14 = vector.load %arg11[%c16, %c0_10] : memref<144x256xbf16, #tpu.memory_space<vmem>>, vector<16x256xbf16>
    tpu.vector_store %arg11[%c16, %c0_10], %13 {strides = array<i32>} : memref<144x256xbf16, #tpu.memory_space<vmem>>, vector<16x256xbf16>,
    %c15_i32 = arith.constant 15 : i32
    %15 = tpu.dynamic_rotate %2 by %c15_i32 dim 1 : vector<16x256xf32>, i32 -> vector<16x256xf32>
    %16 = vector.broadcast %6 : vector<1x256xf32> to vector<16x256xf32>
    %17 = arith.mulf %15, %16 : vector<16x256xf32>
    %18 = arith.truncf %17 : vector<16x256xf32> to vector<16x256xbf16>
    %c32 = arith.constant 32 : index
    %c0_11 = arith.constant 0 : index
    %19 = vector.load %arg11[%c32, %c0_11] : memref<144x256xbf16, #tpu.memory_space<vmem>>, vector<16x256xbf16>
    tpu.vector_store %arg11[%c32, %c0_11], %18 {strides = array<i32>} : memref<144x256xbf16, #tpu.memory_space<vmem>>, vector<16x256xbf16>,
    %c1_i32 = arith.constant 1 : i32
    %20 = tpu.dynamic_rotate %2 by %c1_i32 dim 1 : vector<16x256xf32>, i32 -> vector<16x256xf32>
    %21 = vector.broadcast %4 : vector<1x256xf32> to vector<16x256xf32>
    %22 = arith.mulf %20, %21 : vector<16x256xf32>
    %23 = arith.truncf %22 : vector<16x256xf32> to vector<16x256xbf16>
    %c48 = arith.constant 48 : index
    %c0_12 = arith.constant 0 : index
    %24 = vector.load %arg11[%c48, %c0_12] : memref<144x256xbf16, #tpu.memory_space<vmem>>, vector<16x256xbf16>
    tpu.vector_store %arg11[%c48, %c0_12], %23 {strides = array<i32>} : memref<144x256xbf16, #tpu.memory_space<vmem>>, vector<16x256xbf16>,
    %25 = arith.truncf %2 : vector<16x256xf32> to vector<16x256xbf16>
    %c64 = arith.constant 64 : index
    %c0_13 = arith.constant 0 : index
    %26 = vector.load %arg11[%c64, %c0_13] : memref<144x256xbf16, #tpu.memory_space<vmem>>, vector<16x256xbf16>
    tpu.vector_store %arg11[%c64, %c0_13], %25 {strides = array<i32>} : memref<144x256xbf16, #tpu.memory_space<vmem>>, vector<16x256xbf16>,
    %c255_i32 = arith.constant 255 : i32
    %27 = tpu.dynamic_rotate %2 by %c255_i32 dim 1 : vector<16x256xf32>, i32 -> vector<16x256xf32>
    %28 = vector.broadcast %6 : vector<1x256xf32> to vector<16x256xf32>
    %29 = arith.mulf %27, %28 : vector<16x256xf32>
    %30 = arith.truncf %29 : vector<16x256xf32> to vector<16x256xbf16>
    %c80 = arith.constant 80 : index
    %c0_14 = arith.constant 0 : index
    %31 = vector.load %arg11[%c80, %c0_14] : memref<144x256xbf16, #tpu.memory_space<vmem>>, vector<16x256xbf16>
    tpu.vector_store %arg11[%c80, %c0_14], %30 {strides = array<i32>} : memref<144x256xbf16, #tpu.memory_space<vmem>>, vector<16x256xbf16>,
    %c241_i32 = arith.constant 241 : i32
    %32 = tpu.dynamic_rotate %2 by %c241_i32 dim 1 : vector<16x256xf32>, i32 -> vector<16x256xf32>
    %33 = vector.broadcast %4 : vector<1x256xf32> to vector<16x256xf32>
    %34 = arith.mulf %32, %33 : vector<16x256xf32>
    %35 = arith.truncf %34 : vector<16x256xf32> to vector<16x256xbf16>
    %c96 = arith.constant 96 : index
    %c0_15 = arith.constant 0 : index
    %36 = vector.load %arg11[%c96, %c0_15] : memref<144x256xbf16, #tpu.memory_space<vmem>>, vector<16x256xbf16>
    tpu.vector_store %arg11[%c96, %c0_15], %35 {strides = array<i32>} : memref<144x256xbf16, #tpu.memory_space<vmem>>, vector<16x256xbf16>,
    %c240_i32 = arith.constant 240 : i32
    %37 = tpu.dynamic_rotate %2 by %c240_i32 dim 1 : vector<16x256xf32>, i32 -> vector<16x256xf32>
    %38 = arith.truncf %37 : vector<16x256xf32> to vector<16x256xbf16>
    %c112 = arith.constant 112 : index
    %c0_16 = arith.constant 0 : index
    %39 = vector.load %arg11[%c112, %c0_16] : memref<144x256xbf16, #tpu.memory_space<vmem>>, vector<16x256xbf16>
    tpu.vector_store %arg11[%c112, %c0_16], %38 {strides = array<i32>} : memref<144x256xbf16, #tpu.memory_space<vmem>>, vector<16x256xbf16>,
    %c239_i32 = arith.constant 239 : i32
    %40 = tpu.dynamic_rotate %2 by %c239_i32 dim 1 : vector<16x256xf32>, i32 -> vector<16x256xf32>
    %41 = vector.broadcast %6 : vector<1x256xf32> to vector<16x256xf32>
    %42 = arith.mulf %40, %41 : vector<16x256xf32>
    %43 = arith.truncf %42 : vector<16x256xf32> to vector<16x256xbf16>
    %c128 = arith.constant 128 : index
    %c0_17 = arith.constant 0 : index
    %44 = vector.load %arg11[%c128, %c0_17] : memref<144x256xbf16, #tpu.memory_space<vmem>>, vector<16x256xbf16>
    tpu.vector_store %arg11[%c128, %c0_17], %43 {strides = array<i32>} : memref<144x256xbf16, #tpu.memory_space<vmem>>, vector<16x256xbf16>,
    %c0_18 = arith.constant 0 : index
    %c0_19 = arith.constant 0 : index
    %45 = vector.load %arg4[%c0_18, %c0_19] : memref<16x144xbf16, #tpu.memory_space<vmem>>, vector<16x144xbf16>
    %c0_20 = arith.constant 0 : index
    %c0_21 = arith.constant 0 : index
    %46 = vector.load %arg11[%c0_20, %c0_21] : memref<144x256xbf16, #tpu.memory_space<vmem>>, vector<144x256xbf16>
    %cst = arith.constant dense<0.000000e+00> : vector<16x256xf32>
    %47 = tpu.matmul %45, %46, %cst {dimension_numbers = #tpu.dot_dimension_numbers<[1], [0], [0], [1], [0, 0, 1, 1], [], []>} : vector<16x144xbf16>, vector<144x256xbf16>, vector<16x256xf32> -> vector<16x256xf32>
    %c0_22 = arith.constant 0 : index
    %c0_23 = arith.constant 0 : index
    %48 = vector.load %arg5[%c0_22, %c0_23] : memref<16x1xf32, #tpu.memory_space<vmem>>, vector<16x1xf32>
    %49 = vector.broadcast %48 : vector<16x1xf32> to vector<16x256xf32>
    %50 = arith.addf %47, %49 : vector<16x256xf32>
    %cst_24 = arith.constant 0.00999999977 : f32
    %51 = vector.broadcast %cst_24 : f32 to vector<16x256xf32>
    %52 = arith.mulf %51, %50 : vector<16x256xf32>
    %53 = arith.maximumf %50, %52 : vector<16x256xf32>
    %c0_i32 = arith.constant 0 : i32
    %54 = arith.cmpi eq, %arg1, %c0_i32 : i32
    %c2 = arith.constant 2 : index
    %c0_25 = arith.constant 0 : index
    %c0_26 = arith.constant 0 : index
    %55 = vector.load %arg2[%c2, %c0_25, %c0_26] : memref<4x1x256xf32, #tpu.memory_space<vmem>>, vector<1x1x256xf32>
    %56 = vector.shape_cast %55 : vector<1x1x256xf32> to vector<1x256xf32>
    %cst_27 = arith.constant 1.000000e+00 : f32
    %57 = vector.broadcast %cst_27 : f32 to vector<1x256xf32>
    %58 = arith.select %54, %56, %57 : vector<1x256xf32>
    %c1_i32_28 = arith.constant 1 : i32
    %59 = arith.cmpi eq, %arg1, %c1_i32_28 : i32
    %c3 = arith.constant 3 : index
    %c0_29 = arith.constant 0 : index
    %c0_30 = arith.constant 0 : index
    %60 = vector.load %arg2[%c3, %c0_29, %c0_30] : memref<4x1x256xf32, #tpu.memory_space<vmem>>, vector<1x1x256xf32>
    %61 = vector.shape_cast %60 : vector<1x1x256xf32> to vector<1x256xf32>
    %cst_31 = arith.constant 1.000000e+00 : f32
    %62 = vector.broadcast %cst_31 : f32 to vector<1x256xf32>
    %63 = arith.select %59, %61, %62 : vector<1x256xf32>
    %64 = arith.mulf %58, %63 : vector<1x256xf32>
    %65 = vector.broadcast %64 : vector<1x256xf32> to vector<16x256xf32>
    %66 = arith.mulf %53, %65 : vector<16x256xf32>
    %c17_i32_32 = arith.constant 17 : i32
    %67 = tpu.dynamic_rotate %66 by %c17_i32_32 dim 1 : vector<16x256xf32>, i32 -> vector<16x256xf32>
    %68 = vector.broadcast %4 : vector<1x256xf32> to vector<16x256xf32>
    %69 = arith.mulf %67, %68 : vector<16x256xf32>
    %70 = arith.truncf %69 : vector<16x256xf32> to vector<16x256xbf16>
    %c0_33 = arith.constant 0 : index
    %c0_34 = arith.constant 0 : index
    %71 = vector.load %arg12[%c0_33, %c0_34] : memref<144x256xbf16, #tpu.memory_space<vmem>>, vector<16x256xbf16>
    tpu.vector_store %arg12[%c0_33, %c0_34], %70 {strides = array<i32>} : memref<144x256xbf16, #tpu.memory_space<vmem>>, vector<16x256xbf16>,
    %c16_i32_35 = arith.constant 16 : i32
    %72 = tpu.dynamic_rotate %66 by %c16_i32_35 dim 1 : vector<16x256xf32>, i32 -> vector<16x256xf32>
    %73 = arith.truncf %72 : vector<16x256xf32> to vector<16x256xbf16>
    %c16_36 = arith.constant 16 : index
    %c0_37 = arith.constant 0 : index
    %74 = vector.load %arg12[%c16_36, %c0_37] : memref<144x256xbf16, #tpu.memory_space<vmem>>, vector<16x256xbf16>
    tpu.vector_store %arg12[%c16_36, %c0_37], %73 {strides = array<i32>} : memref<144x256xbf16, #tpu.memory_space<vmem>>, vector<16x256xbf16>,
    %c15_i32_38 = arith.constant 15 : i32
    %75 = tpu.dynamic_rotate %66 by %c15_i32_38 dim 1 : vector<16x256xf32>, i32 -> vector<16x256xf32>
    %76 = vector.broadcast %6 : vector<1x256xf32> to vector<16x256xf32>
    %77 = arith.mulf %75, %76 : vector<16x256xf32>
    %78 = arith.truncf %77 : vector<16x256xf32> to vector<16x256xbf16>
    %c32_39 = arith.constant 32 : index
    %c0_40 = arith.constant 0 : index
    %79 = vector.load %arg12[%c32_39, %c0_40] : memref<144x256xbf16, #tpu.memory_space<vmem>>, vector<16x256xbf16>
    tpu.vector_store %arg12[%c32_39, %c0_40], %78 {strides = array<i32>} : memref<144x256xbf16, #tpu.memory_space<vmem>>, vector<16x256xbf16>,
    %c1_i32_41 = arith.constant 1 : i32
    %80 = tpu.dynamic_rotate %66 by %c1_i32_41 dim 1 : vector<16x256xf32>, i32 -> vector<16x256xf32>
    %81 = vector.broadcast %4 : vector<1x256xf32> to vector<16x256xf32>
    %82 = arith.mulf %80, %81 : vector<16x256xf32>
    %83 = arith.truncf %82 : vector<16x256xf32> to vector<16x256xbf16>
    %c48_42 = arith.constant 48 : index
    %c0_43 = arith.constant 0 : index
    %84 = vector.load %arg12[%c48_42, %c0_43] : memref<144x256xbf16, #tpu.memory_space<vmem>>, vector<16x256xbf16>
    tpu.vector_store %arg12[%c48_42, %c0_43], %83 {strides = array<i32>} : memref<144x256xbf16, #tpu.memory_space<vmem>>, vector<16x256xbf16>,
    %85 = arith.truncf %66 : vector<16x256xf32> to vector<16x256xbf16>
    %c64_44 = arith.constant 64 : index
    %c0_45 = arith.constant 0 : index
    %86 = vector.load %arg12[%c64_44, %c0_45] : memref<144x256xbf16, #tpu.memory_space<vmem>>, vector<16x256xbf16>
    tpu.vector_store %arg12[%c64_44, %c0_45], %85 {strides = array<i32>} : memref<144x256xbf16, #tpu.memory_space<vmem>>, vector<16x256xbf16>,
    %c255_i32_46 = arith.constant 255 : i32
    %87 = tpu.dynamic_rotate %66 by %c255_i32_46 dim 1 : vector<16x256xf32>, i32 -> vector<16x256xf32>
    %88 = vector.broadcast %6 : vector<1x256xf32> to vector<16x256xf32>
    %89 = arith.mulf %87, %88 : vector<16x256xf32>
    %90 = arith.truncf %89 : vector<16x256xf32> to vector<16x256xbf16>
    %c80_47 = arith.constant 80 : index
    %c0_48 = arith.constant 0 : index
    %91 = vector.load %arg12[%c80_47, %c0_48] : memref<144x256xbf16, #tpu.memory_space<vmem>>, vector<16x256xbf16>
    tpu.vector_store %arg12[%c80_47, %c0_48], %90 {strides = array<i32>} : memref<144x256xbf16, #tpu.memory_space<vmem>>, vector<16x256xbf16>,
    %c241_i32_49 = arith.constant 241 : i32
    %92 = tpu.dynamic_rotate %66 by %c241_i32_49 dim 1 : vector<16x256xf32>, i32 -> vector<16x256xf32>
    %93 = vector.broadcast %4 : vector<1x256xf32> to vector<16x256xf32>
    %94 = arith.mulf %92, %93 : vector<16x256xf32>
    %95 = arith.truncf %94 : vector<16x256xf32> to vector<16x256xbf16>
    %c96_50 = arith.constant 96 : index
    %c0_51 = arith.constant 0 : index
    %96 = vector.load %arg12[%c96_50, %c0_51] : memref<144x256xbf16, #tpu.memory_space<vmem>>, vector<16x256xbf16>
    tpu.vector_store %arg12[%c96_50, %c0_51], %95 {strides = array<i32>} : memref<144x256xbf16, #tpu.memory_space<vmem>>, vector<16x256xbf16>,
    %c240_i32_52 = arith.constant 240 : i32
    %97 = tpu.dynamic_rotate %66 by %c240_i32_52 dim 1 : vector<16x256xf32>, i32 -> vector<16x256xf32>
    %98 = arith.truncf %97 : vector<16x256xf32> to vector<16x256xbf16>
    %c112_53 = arith.constant 112 : index
    %c0_54 = arith.constant 0 : index
    %99 = vector.load %arg12[%c112_53, %c0_54] : memref<144x256xbf16, #tpu.memory_space<vmem>>, vector<16x256xbf16>
    tpu.vector_store %arg12[%c112_53, %c0_54], %98 {strides = array<i32>} : memref<144x256xbf16, #tpu.memory_space<vmem>>, vector<16x256xbf16>,
    %c239_i32_55 = arith.constant 239 : i32
    %100 = tpu.dynamic_rotate %66 by %c239_i32_55 dim 1 : vector<16x256xf32>, i32 -> vector<16x256xf32>
    %101 = vector.broadcast %6 : vector<1x256xf32> to vector<16x256xf32>
    %102 = arith.mulf %100, %101 : vector<16x256xf32>
    %103 = arith.truncf %102 : vector<16x256xf32> to vector<16x256xbf16>
    %c128_56 = arith.constant 128 : index
    %c0_57 = arith.constant 0 : index
    %104 = vector.load %arg12[%c128_56, %c0_57] : memref<144x256xbf16, #tpu.memory_space<vmem>>, vector<16x256xbf16>
    tpu.vector_store %arg12[%c128_56, %c0_57], %103 {strides = array<i32>} : memref<144x256xbf16, #tpu.memory_space<vmem>>, vector<16x256xbf16>,
    %c0_58 = arith.constant 0 : index
    %c0_59 = arith.constant 0 : index
    %105 = vector.load %arg6[%c0_58, %c0_59] : memref<16x144xbf16, #tpu.memory_space<vmem>>, vector<16x144xbf16>
    %c0_60 = arith.constant 0 : index
    %c0_61 = arith.constant 0 : index
    %106 = vector.load %arg12[%c0_60, %c0_61] : memref<144x256xbf16, #tpu.memory_space<vmem>>, vector<144x256xbf16>
    %cst_62 = arith.constant dense<0.000000e+00> : vector<16x256xf32>
    %107 = tpu.matmul %105, %106, %cst_62 {dimension_numbers = #tpu.dot_dimension_numbers<[1], [0], [0], [1], [0, 0, 1, 1], [], []>} : vector<16x144xbf16>, vector<144x256xbf16>, vector<16x256xf32> -> vector<16x256xf32>
    %c0_63 = arith.constant 0 : index
    %c0_64 = arith.constant 0 : index
    %108 = vector.load %arg7[%c0_63, %c0_64] : memref<16x1xf32, #tpu.memory_space<vmem>>, vector<16x1xf32>
    %109 = vector.broadcast %108 : vector<16x1xf32> to vector<16x256xf32>
    %110 = arith.addf %107, %109 : vector<16x256xf32>
    %cst_65 = arith.constant 0.00999999977 : f32
    %111 = vector.broadcast %cst_65 : f32 to vector<16x256xf32>
    %112 = arith.mulf %111, %110 : vector<16x256xf32>
    %113 = arith.maximumf %110, %112 : vector<16x256xf32>
    %c0_66 = arith.constant 0 : index
    %c0_67 = arith.constant 0 : index
    %114 = vector.load %arg8[%c0_66, %c0_67] : memref<16x16xbf16, #tpu.memory_space<vmem>>, vector<16x16xbf16>
    %cst_68 = arith.constant dense<0.000000e+00> : vector<16x256xf32>
    %115 = tpu.matmul %114, %1, %cst_68 {dimension_numbers = #tpu.dot_dimension_numbers<[1], [0], [0], [1], [0, 0, 1, 1], [], []>} : vector<16x16xbf16>, vector<16x256xbf16>, vector<16x256xf32> -> vector<16x256xf32>
    %c0_69 = arith.constant 0 : index
    %c0_70 = arith.constant 0 : index
    %116 = vector.load %arg9[%c0_69, %c0_70] : memref<16x1xf32, #tpu.memory_space<vmem>>, vector<16x1xf32>
    %117 = vector.broadcast %116 : vector<16x1xf32> to vector<16x256xf32>
    %118 = arith.addf %115, %117 : vector<16x256xf32>
    %119 = arith.addf %113, %118 : vector<16x256xf32>
    %c224_i32 = arith.constant 224 : i32
    %120 = tpu.dynamic_rotate %119 by %c224_i32 dim 1 : vector<16x256xf32>, i32 -> vector<16x256xf32>
    %121 = vector.extract_strided_slice %120 {offsets = [0, 0], sizes = [16, 128], strides = [1, 1]} : vector<16x256xf32> to vector<16x128xf32>
    %122 = arith.truncf %121 : vector<16x128xf32> to vector<16x128xbf16>
    %c0_71 = arith.constant 0 : index
    %c0_72 = arith.constant 0 : index
    %c0_73 = arith.constant 0 : index
    %123 = vector.load %arg10[%c0_71, %c0_72, %c0_73] : memref<1x16x128xbf16, #tpu.memory_space<vmem>>, vector<1x16x128xbf16>
    %124 = vector.shape_cast %123 : vector<1x16x128xbf16> to vector<16x128xbf16>
    %125 = vector.shape_cast %122 : vector<16x128xbf16> to vector<1x16x128xbf16>
    tpu.vector_store %arg10[%c0_71, %c0_72, %c0_73], %125 {strides = array<i32>} : memref<1x16x128xbf16, #tpu.memory_space<vmem>>, vector<1x16x128xbf16>,
    return
  }
  func.func @transform_0(%arg0: i32, %arg1: i32) -> (i32, i32, i32) {
    %c0_i32 = arith.constant 0 : i32
    %c0_i32_0 = arith.constant 0 : i32
    %c0_i32_1 = arith.constant 0 : i32
    %c0_i32_2 = arith.constant 0 : i32
    return %c0_i32, %c0_i32_0, %c0_i32_1 : i32, i32, i32
  }
  func.func @transform_1(%arg0: i32, %arg1: i32) -> (i32, i32, i32, i32) {
    %c0_i32 = arith.constant 0 : i32
    %c0_i32_0 = arith.constant 0 : i32
    %c0_i32_1 = arith.constant 0 : i32
    return %arg0, %arg1, %c0_i32, %c0_i32_0 : i32, i32, i32, i32
  }
  func.func @transform_2(%arg0: i32, %arg1: i32) -> (i32, i32) {
    %c0_i32 = arith.constant 0 : i32
    %c0_i32_0 = arith.constant 0 : i32
    %c0_i32_1 = arith.constant 0 : i32
    return %c0_i32, %c0_i32_0 : i32, i32
  }
  func.func @transform_3(%arg0: i32, %arg1: i32) -> (i32, i32) {
    %c0_i32 = arith.constant 0 : i32
    %c0_i32_0 = arith.constant 0 : i32
    %c0_i32_1 = arith.constant 0 : i32
    return %c0_i32, %c0_i32_0 : i32, i32
  }
  func.func @transform_4(%arg0: i32, %arg1: i32) -> (i32, i32) {
    %c0_i32 = arith.constant 0 : i32
    %c0_i32_0 = arith.constant 0 : i32
    %c0_i32_1 = arith.constant 0 : i32
    return %c0_i32, %c0_i32_0 : i32, i32
  }
  func.func @transform_5(%arg0: i32, %arg1: i32) -> (i32, i32) {
    %c0_i32 = arith.constant 0 : i32
    %c0_i32_0 = arith.constant 0 : i32
    %c0_i32_1 = arith.constant 0 : i32
    return %c0_i32, %c0_i32_0 : i32, i32
  }
  func.func @transform_6(%arg0: i32, %arg1: i32) -> (i32, i32) {
    %c0_i32 = arith.constant 0 : i32
    %c0_i32_0 = arith.constant 0 : i32
    %c0_i32_1 = arith.constant 0 : i32
    return %c0_i32, %c0_i32_0 : i32, i32
  }
  func.func @transform_7(%arg0: i32, %arg1: i32) -> (i32, i32) {
    %c0_i32 = arith.constant 0 : i32
    %c0_i32_0 = arith.constant 0 : i32
    %c0_i32_1 = arith.constant 0 : i32
    return %c0_i32, %c0_i32_0 : i32, i32
  }
  func.func @transform_8(%arg0: i32, %arg1: i32) -> (i32, i32, i32) {
    %c0_i32 = arith.constant 0 : i32
    %c0_i32_0 = arith.constant 0 : i32
    return %arg0, %c0_i32, %arg1 : i32, i32, i32
  }
}

</mosaic_0001>

<llo_original>
// kernel: tpu_custom_call.1
$region0: #{tpu_custom_call.1}
  #allocation0 [shape = 'u32[]', space=smem, size = 0x4, offset = 0x4, fixed_abs, tag = 'smem constant byte address 0x4 - core index']
  #allocation1 [shape = 'u32[144,128]{1,0:T(1,128)}', space=vmem, size = 0x12000, scoped, tag = 'internal scratch']
  #allocation2 [shape = 'bf16[144,256]{1,0:T(16,128)(2,1)}', space=vmem, size = 0x12000, scoped, tag = 'scratch operand']
  #allocation3 [shape = 'bf16[144,256]{1,0:T(16,128)(2,1)}', space=vmem, size = 0x12000, scoped, tag = 'scratch operand']
  %s0 = inlined_call_operand.vmem [shape: f32[4,1,256], index: 0, kind: input, shape index: {}]
  %s1 = inlined_call_operand.hbm [shape: bf16[2,2,16,256], index: 1, kind: input, shape index: {}]
  %s2 = inlined_call_operand.vmem [shape: bf16[16,144], index: 2, kind: input, shape index: {}]
  %s3 = inlined_call_operand.vmem [shape: f32[16,1], index: 3, kind: input, shape index: {}]
  %s4 = inlined_call_operand.vmem [shape: bf16[16,144], index: 4, kind: input, shape index: {}]
  %s5 = inlined_call_operand.vmem [shape: f32[16,1], index: 5, kind: input, shape index: {}]
  %s6 = inlined_call_operand.vmem [shape: bf16[16,16], index: 6, kind: input, shape index: {}]
  %s7 = inlined_call_operand.vmem [shape: f32[16,1], index: 7, kind: input, shape index: {}]
  %s8 = inlined_call_operand.hbm [shape: bf16[2,16,256], index: 8, kind: output, shape index: {}]
  %s9 = sld [smem:[#allocation0]]
  $region69: #{tpu_custom_call.1} parent=0
    _
  %s11 = ssub.s32 1, %s9
  %s12 = scalar_select 0, %s11, %s9
  $region1: #{tpu_custom_call.1} parent=0
    #allocation4 [shape = 'u8[16384]{0}', space=vmem, size = 0x4000, scoped, tag = 'input window, operand 1']
    #allocation5 [shape = 's32[2]{0}', space=sflag, size = 0x8, scoped, tag = 'scoped memory for tpu_custom_call.1']
    #allocation6 [shape = 's32[2]{0}', space=sflag, size = 0x8, scoped, tag = 'scoped memory for tpu_custom_call.1']
    #allocation7 [shape = 'u8[8192]{0}', space=vmem, size = 0x2000, scoped, tag = 'output window, operand 0']
    %13 = vsyncpa [#allocation5], 0
    %s14 = scalar_lea.sflag [#allocation5], 1
    %15 = vsyncpa %s14, 0
    %16 = vsyncpa [#allocation6], 0
    %s17 = scalar_lea.sflag [#allocation6], 1
    %18 = vsyncpa %s17, 0
    loop: start=0, step=1, limit=6
    $region2: #{tpu_custom_call.1} parent=1 // loop_pre_header
      _
    $region3: #{tpu_custom_call.1} parent=1 // loop_header
      %s20 = sphi 0, %s24
      %p21 = scmp.ge.s32.totalorder %s20, 6
      %s27 = sphi 0, %s39
      %s28 = sphi 0, %s35
      %s29 = sphi 0, %s27
      %s30 = sphi 0, %s28
      %s31 = sphi 0, %s29
      %s32 = sphi 0, %s30
      %s40 = sphi 0, %s40
      %s42 = sphi 0, %s40
      %s43 = sphi 0, %s42
      %s57 = sphi 0, %s43
      %s65 = sphi 0, %s67
      %s68 = sphi 0, %s65
      %s69 = sphi 0, %s68
      %s85 = sphi 0, %s69
      %s89 = sphi 0, %s89
      %s91 = sphi 0, %s89
      %s92 = sphi 0, %s91
      %s106 = sphi 0, %s92
      %s110 = sphi 0, %s110
      %s112 = sphi 0, %s110
      %s113 = sphi 0, %s112
      %s127 = sphi 0, %s113
      %s131 = sphi 0, %s131
      %s133 = sphi 0, %s131
      %s134 = sphi 0, %s133
      %s148 = sphi 0, %s134
      %s152 = sphi 0, %s152
      %s154 = sphi 0, %s152
      %s155 = sphi 0, %s154
      %s169 = sphi 0, %s155
      %s173 = sphi 0, %s173
      %s175 = sphi 0, %s173
      %s176 = sphi 0, %s175
      %s190 = sphi 0, %s176
      %s194 = sphi 0, %s194
      %s196 = sphi 0, %s194
      %s197 = sphi 0, %s196
      %s211 = sphi 0, %s197
      %s219 = sphi 0, %s221
      %s222 = sphi 0, %s219
      %s223 = sphi 0, %s222
      %s239 = sphi 0, %s223
    $region4: #{tpu_custom_call.1} parent=1 // loop_header_branch
      %23 = sbr.rel (%p21) target = $region8
    $region5: #{tpu_custom_call.1} parent=1 // loop_body
      %s25 = ssub.s32 %s20, 1
      %s26 = ssub.s32 %s20, 2
      %s33 = sadd.s32 1, %s28
      %p34 = scmp.ge.s32.totalorder %s33, 2
      %s35 = scalar_select %p34, 0, %s33
      %s36 = sadd.s32 1, %s27
      %s37 = scalar_select %p34, %s36, %s27
      %p38 = scmp.ge.s32.totalorder %s37, 2
      %s39 = scalar_select %p38, 0, %s37
      %s41 = sadd.s32 %s40, 1
      %p44 = scmp.eq.s32.totalorder %s20, 3
      %p45 = scmp.ne.s32.totalorder %s40, %s42
      %p46 = scmp.eq.s32.totalorder %s20, 0
      %p47 = por %p45, %p46
      %p48 = scmp.ne.s32.totalorder %s40, %s42
      %p49 = scmp.eq.s32.totalorder %s25, 3
      %p50 = por %p48, %p49
      %p51 = scmp.ne.s32.totalorder %s42, %s43
      %p52 = scmp.eq.s32.totalorder %s25, 0
      %p53 = por %p51, %p52
      %p54 = scmp.ne.s32.totalorder %s42, %s43
      %p55 = scmp.eq.s32.totalorder %s26, 3
      %p56 = por %p54, %p55
      %p58 = scmp.ne.s32.totalorder %s43, %s57
      %p59 = scmp.eq.s32.totalorder %s26, 0
      %p60 = por %p58, %p59
      %s61 = ssub.s32 %s27, %s39
      %s62 = ssub.s32 %s28, %s35
      %s63 = sor.u32 %s61, %s62
      %p64 = scmp.eq.s32.totalorder %s63, 0
      %s66 = sadd.s32 %s65, 1
      %s67 = scalar_select %p64, %s65, %s66
      %p70 = pneg %p64
      %p71 = scmp.eq.s32.totalorder %s20, 3
      %p72 = por %p70, %p71
      %p73 = scmp.ne.s32.totalorder %s65, %s68
      %p74 = scmp.eq.s32.totalorder %s20, 0
      %p75 = por %p73, %p74
      %p76 = scmp.ne.s32.totalorder %s65, %s68
      %p77 = scmp.eq.s32.totalorder %s25, 3
      %p78 = por %p76, %p77
      %p79 = scmp.ne.s32.totalorder %s68, %s69
      %p80 = scmp.eq.s32.totalorder %s25, 0
      %p81 = por %p79, %p80
      %p82 = scmp.ne.s32.totalorder %s68, %s69
      %p83 = scmp.eq.s32.totalorder %s26, 3
      %p84 = por %p82, %p83
      %p86 = scmp.ne.s32.totalorder %s69, %s85
      %p87 = scmp.eq.s32.totalorder %s26, 0
      %p88 = por %p86, %p87
      %s90 = sadd.s32 %s89, 1
      %p93 = scmp.eq.s32.totalorder %s20, 3
      %p94 = scmp.ne.s32.totalorder %s89, %s91
      %p95 = scmp.eq.s32.totalorder %s20, 0
      %p96 = por %p94, %p95
      %p97 = scmp.ne.s32.totalorder %s89, %s91
      %p98 = scmp.eq.s32.totalorder %s25, 3
      %p99 = por %p97, %p98
      %p100 = scmp.ne.s32.totalorder %s91, %s92
      %p101 = scmp.eq.s32.totalorder %s25, 0
      %p102 = por %p100, %p101
      %p103 = scmp.ne.s32.totalorder %s91, %s92
      %p104 = scmp.eq.s32.totalorder %s26, 3
      %p105 = por %p103, %p104
      %p107 = scmp.ne.s32.totalorder %s92, %s106
      %p108 = scmp.eq.s32.totalorder %s26, 0
      %p109 = por %p107, %p108
      %s111 = sadd.s32 %s110, 1
      %p114 = scmp.eq.s32.totalorder %s20, 3
      %p115 = scmp.ne.s32.totalorder %s110, %s112
      %p116 = scmp.eq.s32.totalorder %s20, 0
      %p117 = por %p115, %p116
      %p118 = scmp.ne.s32.totalorder %s110, %s112
      %p119 = scmp.eq.s32.totalorder %s25, 3
      %p120 = por %p118, %p119
      %p121 = scmp.ne.s32.totalorder %s112, %s113
      %p122 = scmp.eq.s32.totalorder %s25, 0
      %p123 = por %p121, %p122
      %p124 = scmp.ne.s32.totalorder %s112, %s113
      %p125 = scmp.eq.s32.totalorder %s26, 3
      %p126 = por %p124, %p125
      %p128 = scmp.ne.s32.totalorder %s113, %s127
      %p129 = scmp.eq.s32.totalorder %s26, 0
      %p130 = por %p128, %p129
      %s132 = sadd.s32 %s131, 1
      %p135 = scmp.eq.s32.totalorder %s20, 3
      %p136 = scmp.ne.s32.totalorder %s131, %s133
      %p137 = scmp.eq.s32.totalorder %s20, 0
      %p138 = por %p136, %p137
      %p139 = scmp.ne.s32.totalorder %s131, %s133
      %p140 = scmp.eq.s32.totalorder %s25, 3
      %p141 = por %p139, %p140
      %p142 = scmp.ne.s32.totalorder %s133, %s134
      %p143 = scmp.eq.s32.totalorder %s25, 0
      %p144 = por %p142, %p143
      %p145 = scmp.ne.s32.totalorder %s133, %s134
      %p146 = scmp.eq.s32.totalorder %s26, 3
      %p147 = por %p145, %p146
      %p149 = scmp.ne.s32.totalorder %s134, %s148
      %p150 = scmp.eq.s32.totalorder %s26, 0
      %p151 = por %p149, %p150
      %s153 = sadd.s32 %s152, 1
      %p156 = scmp.eq.s32.totalorder %s20, 3
      %p157 = scmp.ne.s32.totalorder %s152, %s154
      %p158 = scmp.eq.s32.totalorder %s20, 0
      %p159 = por %p157, %p158
      %p160 = scmp.ne.s32.totalorder %s152, %s154
      %p161 = scmp.eq.s32.totalorder %s25, 3
      %p162 = por %p160, %p161
      %p163 = scmp.ne.s32.totalorder %s154, %s155
      %p164 = scmp.eq.s32.totalorder %s25, 0
      %p165 = por %p163, %p164
      %p166 = scmp.ne.s32.totalorder %s154, %s155
      %p167 = scmp.eq.s32.totalorder %s26, 3
      %p168 = por %p166, %p167
      %p170 = scmp.ne.s32.totalorder %s155, %s169
      %p171 = scmp.eq.s32.totalorder %s26, 0
      %p172 = por %p170, %p171
      %s174 = sadd.s32 %s173, 1
      %p177 = scmp.eq.s32.totalorder %s20, 3
      %p178 = scmp.ne.s32.totalorder %s173, %s175
      %p179 = scmp.eq.s32.totalorder %s20, 0
      %p180 = por %p178, %p179
      %p181 = scmp.ne.s32.totalorder %s173, %s175
      %p182 = scmp.eq.s32.totalorder %s25, 3
      %p183 = por %p181, %p182
      %p184 = scmp.ne.s32.totalorder %s175, %s176
      %p185 = scmp.eq.s32.totalorder %s25, 0
      %p186 = por %p184, %p185
      %p187 = scmp.ne.s32.totalorder %s175, %s176
      %p188 = scmp.eq.s32.totalorder %s26, 3
      %p189 = por %p187, %p188
      %p191 = scmp.ne.s32.totalorder %s176, %s190
      %p192 = scmp.eq.s32.totalorder %s26, 0
      %p193 = por %p191, %p192
      %s195 = sadd.s32 %s194, 1
      %p198 = scmp.eq.s32.totalorder %s20, 3
      %p199 = scmp.ne.s32.totalorder %s194, %s196
      %p200 = scmp.eq.s32.totalorder %s20, 0
      %p201 = por %p199, %p200
      %p202 = scmp.ne.s32.totalorder %s194, %s196
      %p203 = scmp.eq.s32.totalorder %s25, 3
      %p204 = por %p202, %p203
      %p205 = scmp.ne.s32.totalorder %s196, %s197
      %p206 = scmp.eq.s32.totalorder %s25, 0
      %p207 = por %p205, %p206
      %p208 = scmp.ne.s32.totalorder %s196, %s197
      %p209 = scmp.eq.s32.totalorder %s26, 3
      %p210 = por %p208, %p209
      %p212 = scmp.ne.s32.totalorder %s197, %s211
      %p213 = scmp.eq.s32.totalorder %s26, 0
      %p214 = por %p212, %p213
      %s215 = ssub.s32 %s27, %s39
      %s216 = ssub.s32 %s28, %s35
      %s217 = sor.u32 %s215, %s216
      %p218 = scmp.eq.s32.totalorder %s217, 0
      %s220 = sadd.s32 %s219, 1
      %s221 = scalar_select %p218, %s219, %s220
      %p224 = pneg %p218
      %p225 = scmp.eq.s32.totalorder %s20, 3
      %p226 = por %p224, %p225
      %p227 = scmp.ne.s32.totalorder %s219, %s222
      %p228 = scmp.eq.s32.totalorder %s20, 0
      %p229 = por %p227, %p228
      %p230 = scmp.ne.s32.totalorder %s219, %s222
      %p231 = scmp.eq.s32.totalorder %s25, 3
      %p232 = por %p230, %p231
      %p233 = scmp.ne.s32.totalorder %s222, %s223
      %p234 = scmp.eq.s32.totalorder %s25, 0
      %p235 = por %p233, %p234
      %p236 = scmp.ne.s32.totalorder %s222, %s223
      %p237 = scmp.eq.s32.totalorder %s26, 3
      %p238 = por %p236, %p237
      %p240 = scmp.ne.s32.totalorder %s223, %s239
      %p241 = scmp.eq.s32.totalorder %s26, 0
      %p242 = por %p240, %p241
      %p243 = scmp.le.s32.totalorder 1, %s20
      %p244 = scmp.lt.s32.totalorder %s20, 5
      %p245 = pnand %p243, %p244
      %p246 = pneg %p245
      // Predicated region
      $region9: #{tpu_custom_call.1} parent=5 // pred_check
        _
      $region10: #{tpu_custom_call.1} parent=5 // pred_check_branch
        %248 = sbr.rel (%p245) target = $region12
      $region11: #{tpu_custom_call.1} parent=5 // pred_region
        %s249 = ssub.s32 %s20, 1
        // Predicated region
        $region13: #{tpu_custom_call.1} parent=11 // pred_check
          %p250 = pneg %p53
        $region14: #{tpu_custom_call.1} parent=11 // pred_check_branch
          %252 = sbr.rel (%p250) target = $region16
        $region15: #{tpu_custom_call.1} parent=11 // pred_region
          _
        $region16: #{tpu_custom_call.1} parent=11 // pred_fallthru
          _
        // Predicated region
        $region17: #{tpu_custom_call.1} parent=11 // pred_check
          %p253 = pneg %p102
        $region18: #{tpu_custom_call.1} parent=11 // pred_check_branch
          %255 = sbr.rel (%p253) target = $region20
        $region19: #{tpu_custom_call.1} parent=11 // pred_region
          _
        $region20: #{tpu_custom_call.1} parent=11 // pred_fallthru
          _
        // Predicated region
        $region21: #{tpu_custom_call.1} parent=11 // pred_check
          %p256 = pneg %p123
        $region22: #{tpu_custom_call.1} parent=11 // pred_check_branch
          %258 = sbr.rel (%p256) target = $region24
        $region23: #{tpu_custom_call.1} parent=11 // pred_region
          _
        $region24: #{tpu_custom_call.1} parent=11 // pred_fallthru
          _
        // Predicated region
        $region25: #{tpu_custom_call.1} parent=11 // pred_check
          %p259 = pneg %p144
        $region26: #{tpu_custom_call.1} parent=11 // pred_check_branch
          %261 = sbr.rel (%p259) target = $region28
        $region27: #{tpu_custom_call.1} parent=11 // pred_region
          _
        $region28: #{tpu_custom_call.1} parent=11 // pred_fallthru
          _
        // Predicated region
        $region29: #{tpu_custom_call.1} parent=11 // pred_check
          %p262 = pneg %p165
        $region30: #{tpu_custom_call.1} parent=11 // pred_check_branch
          %264 = sbr.rel (%p262) target = $region32
        $region31: #{tpu_custom_call.1} parent=11 // pred_region
          _
        $region32: #{tpu_custom_call.1} parent=11 // pred_fallthru
          _
        // Predicated region
        $region33: #{tpu_custom_call.1} parent=11 // pred_check
          %p265 = pneg %p186
        $region34: #{tpu_custom_call.1} parent=11 // pred_check_branch
          %267 = sbr.rel (%p265) target = $region36
        $region35: #{tpu_custom_call.1} parent=11 // pred_region
          _
        $region36: #{tpu_custom_call.1} parent=11 // pred_fallthru
          _
        // Predicated region
        $region37: #{tpu_custom_call.1} parent=11 // pred_check
          %p268 = pneg %p207
        $region38: #{tpu_custom_call.1} parent=11 // pred_check_branch
          %270 = sbr.rel (%p268) target = $region40
        $region39: #{tpu_custom_call.1} parent=11 // pred_region
          _
        $region40: #{tpu_custom_call.1} parent=11 // pred_fallthru
          _
      $region12: #{tpu_custom_call.1} parent=5 // pred_fallthru
        _
      %p271 = scmp.lt.s32.totalorder %s20, 4
      // Predicated region
      $region41: #{tpu_custom_call.1} parent=5 // pred_check
        %p272 = pneg %p271
      $region42: #{tpu_custom_call.1} parent=5 // pred_check_branch
        %274 = sbr.rel (%p272) target = $region44
      $region43: #{tpu_custom_call.1} parent=5 // pred_region
        // Predicated region
        $region45: #{tpu_custom_call.1} parent=43 // pred_check
          %p275 = pneg %p75
        $region46: #{tpu_custom_call.1} parent=43 // pred_check_branch
          %277 = sbr.rel (%p275) target = $region48
        $region47: #{tpu_custom_call.1} parent=43 // pred_region
          %s278 = sand.u32 %s65, 1
          %s279 = scalar_lea.sflag [#allocation5], %s278
          %s280 = sand.u32 %s65, 1
          %s281 = smul.addr %s280, 16
          %s282 = scalar_lea.vmem [#allocation4], %s281
          %s284 = ssub.s32 256, 256
          %285 = vsyncadd %s279, %s284
          %s286 = smul.addr %s28, 4
          %s287 = smul.addr %s27, 8
          %s288 = sadd.s32 %s286, %s287
          %s289 = smul.addr %s288, 64
          %s290 = scalar_lea.hbm %s1, %s289
          %s291 = sshll.u32 %s282, 4
          %s292 = int_to_ptr.vmem [resolvable:$true] %s291
          %297 = dma.hbm_to_vmem [thread:$0]  %s290, 256, %s292, %s279, 128, 128, 8
        $region48: #{tpu_custom_call.1} parent=43 // pred_fallthru
          _
      $region44: #{tpu_custom_call.1} parent=5 // pred_fallthru
        _
      %p298 = scmp.le.s32.totalorder 1, %s20
      %p299 = scmp.lt.s32.totalorder %s20, 5
      %p300 = pnand %p298, %p299
      %p301 = pneg %p300
      // Predicated region
      $region49: #{tpu_custom_call.1} parent=5 // pred_check
        _
      $region50: #{tpu_custom_call.1} parent=5 // pred_check_branch
        %303 = sbr.rel (%p300) target = $region52
      $region51: #{tpu_custom_call.1} parent=5 // pred_region
        %s304 = ssub.s32 %s20, 1
        %s305 = sand.u32 %s68, 1
        %s306 = scalar_lea.sflag [#allocation5], %s305
        %s307 = sand.u32 %s68, 1
        %s308 = smul.addr %s307, 16
        %s309 = scalar_lea.vmem [#allocation4], %s308
        // Predicated region
        $region53: #{tpu_custom_call.1} parent=51 // pred_check
          %p310 = pneg %p81
        $region54: #{tpu_custom_call.1} parent=51 // pred_check_branch
          %312 = sbr.rel (%p310) target = $region56
        $region55: #{tpu_custom_call.1} parent=51 // pred_region
          %313 = dma.done %s306, 256
        $region56: #{tpu_custom_call.1} parent=51 // pred_fallthru
          _
        %p314 = pneg %p53
        %p315 = pneg %p50
        %s316 = sand.u32 %s68, 1
        %s317 = scalar_lea.sflag [#allocation5], %s316
        %s318 = sand.u32 %s68, 1
        %s319 = smul.addr %s318, 16
        %s320 = scalar_lea.vmem [#allocation4], %s319
        %p321 = pneg %p81
        %p322 = pneg %p78
        %p323 = pneg %p102
        %p324 = pneg %p99
        %p325 = pneg %p123
        %p326 = pneg %p120
        %p327 = pneg %p144
        %p328 = pneg %p141
        %p329 = pneg %p165
        %p330 = pneg %p162
        %p331 = pneg %p186
        %p332 = pneg %p183
        %p333 = pneg %p207
        %p334 = pneg %p204
        %p335 = pneg %p235
        %p336 = pneg %p232
        %s337 = sand.u32 %s222, 1
        %s338 = scalar_lea.sflag [#allocation6], %s337
        %s339 = sand.u32 %s222, 1
        %s340 = smul.addr %s339, 8
        %s341 = scalar_lea.vmem [#allocation7], %s340
        %v343 = vld [vmem:[%s309] sm:$0xff]
        %v344 = vld [vmem:[%s309 + $0x8] sm:$0xff]
        %v345 = vunpack.c.l.bf16 %v343
        %v346 = vunpack.c.h.bf16 %v343
        %v347 = vunpack.c.l.bf16 %v344
        %v348 = vunpack.c.h.bf16 %v344
        %v349 = vld [vmem:[%s0] sm:$0x3]
        %s350 = scalar_lea.vmem %s0, 2
        %v351 = vld [vmem:[%s350] sm:$0x3]
        %352 = vrot.lane.b32.xlu0 %v345, 17
        %v353 = vpop.permute.xlu0 %352
        %354 = vrot.lane.b32.xlu0 %v347, 17
        %v355 = vpop.permute.xlu0 %354
        %356 = vrot.lane.b32.xlu0 %v346, 17
        %v357 = vpop.permute.xlu0 %356
        %358 = vrot.lane.b32.xlu0 %v348, 17
        %v359 = vpop.permute.xlu0 %358
        %v360 = vlaneseq
        %v361 = vand.u32 %v360, 127
        %vm362 = vcmp.lt.s32.totalorder %v361, 17
        %v363 = vsel %vm362, %v353, %v357
        %v364 = vsel %vm362, %v355, %v359
        %v365 = vsel %vm362, %v357, %v353
        %v366 = vsel %vm362, %v359, %v355
        %v368 = vlaneseq
        %v369 = vshrl.u32 %v368, 7
        %v370 = vsub.s32 0, %v369
        %v371 = vrot.slane %v349, %v370
        %v372 = vlaneseq
        %v373 = vshrl.u32 %v372, 7
        %v374 = vsub.s32 1, %v373
        %v375 = vrot.slane %v349, %v374
        %v378 = vmul.f32 %v365, %v371
        %v379 = vmul.f32 %v363, %v375
        %v380 = vmul.f32 %v366, %v371
        %v381 = vmul.f32 %v364, %v375
        %v382 = vpack.c.bf16 %v380, %v378
        %v383 = vpack.c.bf16 %v381, %v379
        %384 = vst [vmem:[#allocation2] sm:$0xff] %v382
        %385 = vst [vmem:[#allocation2 + $0x8] sm:$0xff] %v383
        %386 = vrot.lane.b32.xlu0 %v345, 16
        %v387 = vpop.permute.xlu0 %386
        %388 = vrot.lane.b32.xlu0 %v347, 16
        %v389 = vpop.permute.xlu0 %388
        %390 = vrot.lane.b32.xlu0 %v346, 16
        %v391 = vpop.permute.xlu0 %390
        %392 = vrot.lane.b32.xlu0 %v348, 16
        %v393 = vpop.permute.xlu0 %392
        %vm394 = vcmp.lt.s32.totalorder %v361, 16
        %v395 = vsel %vm394, %v387, %v391
        %v396 = vsel %vm394, %v389, %v393
        %v397 = vsel %vm394, %v391, %v387
        %v398 = vsel %vm394, %v393, %v389
        %v399 = vpack.c.bf16 %v398, %v397
        %v400 = vpack.c.bf16 %v396, %v395
        %401 = vst [vmem:[#allocation2 + $0x10] sm:$0xff] %v399
        %402 = vst [vmem:[#allocation2 + $0x18] sm:$0xff] %v400
        %403 = vrot.lane.b32.xlu0 %v345, 15
        %v404 = vpop.permute.xlu0 %403
        %405 = vrot.lane.b32.xlu0 %v347, 15
        %v406 = vpop.permute.xlu0 %405
        %407 = vrot.lane.b32.xlu0 %v346, 15
        %v408 = vpop.permute.xlu0 %407
        %409 = vrot.lane.b32.xlu0 %v348, 15
        %v410 = vpop.permute.xlu0 %409
        %vm411 = vcmp.lt.s32.totalorder %v361, 15
        %v412 = vsel %vm411, %v404, %v408
        %v413 = vsel %vm411, %v406, %v410
        %v414 = vsel %vm411, %v408, %v404
        %v415 = vsel %vm411, %v410, %v406
        %v417 = vlaneseq
        %v418 = vshrl.u32 %v417, 7
        %v419 = vsub.s32 0, %v418
        %v420 = vrot.slane %v351, %v419
        %v421 = vlaneseq
        %v422 = vshrl.u32 %v421, 7
        %v423 = vsub.s32 1, %v422
        %v424 = vrot.slane %v351, %v423
        %v427 = vmul.f32 %v414, %v420
        %v428 = vmul.f32 %v412, %v424
        %v429 = vmul.f32 %v415, %v420
        %v430 = vmul.f32 %v413, %v424
        %v431 = vpack.c.bf16 %v429, %v427
        %v432 = vpack.c.bf16 %v430, %v428
        %433 = vst [vmem:[#allocation2 + $0x20] sm:$0xff] %v431
        %434 = vst [vmem:[#allocation2 + $0x28] sm:$0xff] %v432
        %435 = vrot.lane.b32.xlu0 %v345, 1
        %v436 = vpop.permute.xlu0 %435
        %437 = vrot.lane.b32.xlu0 %v347, 1
        %v438 = vpop.permute.xlu0 %437
        %439 = vrot.lane.b32.xlu0 %v346, 1
        %v440 = vpop.permute.xlu0 %439
        %441 = vrot.lane.b32.xlu0 %v348, 1
        %v442 = vpop.permute.xlu0 %441
        %vm443 = vcmp.lt.s32.totalorder %v361, 1
        %v444 = vsel %vm443, %v436, %v440
        %v445 = vsel %vm443, %v438, %v442
        %v446 = vsel %vm443, %v440, %v436
        %v447 = vsel %vm443, %v442, %v438
        %v448 = vmul.f32 %v446, %v371
        %v449 = vmul.f32 %v444, %v375
        %v450 = vmul.f32 %v447, %v371
        %v451 = vmul.f32 %v445, %v375
        %v452 = vpack.c.bf16 %v450, %v448
        %v453 = vpack.c.bf16 %v451, %v449
        %454 = vst [vmem:[#allocation2 + $0x30] sm:$0xff] %v452
        %455 = vst [vmem:[#allocation2 + $0x38] sm:$0xff] %v453
        %v458 = vunpack.c.l.b16 %v343
        %v459 = vunpack.c.h.b16 %v343
        %v460 = vunpack.c.l.b16 %v344
        %v461 = vunpack.c.h.b16 %v344
        %v462 = vpack.c.b16 %v460, %v458
        %v463 = vpack.c.b16 %v461, %v459
        %466 = vst [vmem:[#allocation2 + $0x40] sm:$0xff] %v462
        %467 = vst [vmem:[#allocation2 + $0x48] sm:$0xff] %v463
        %468 = vrot.lane.b32.xlu0 %v345, 127
        %v469 = vpop.permute.xlu0 %468
        %470 = vrot.lane.b32.xlu0 %v347, 127
        %v471 = vpop.permute.xlu0 %470
        %472 = vrot.lane.b32.xlu0 %v346, 127
        %v473 = vpop.permute.xlu0 %472
        %474 = vrot.lane.b32.xlu0 %v348, 127
        %v475 = vpop.permute.xlu0 %474
        %vm476 = vcmp.lt.s32.totalorder %v361, 127
        %v477 = vsel %vm476, %v469, %v473
        %v478 = vsel %vm476, %v471, %v475
        %v479 = vsel %vm476, %v473, %v469
        %v480 = vsel %vm476, %v475, %v471
        %v481 = vmul.f32 %v477, %v420
        %v482 = vmul.f32 %v479, %v424
        %v483 = vmul.f32 %v478, %v420
        %v484 = vmul.f32 %v480, %v424
        %v485 = vpack.c.bf16 %v483, %v481
        %v486 = vpack.c.bf16 %v484, %v482
        %487 = vst [vmem:[#allocation2 + $0x50] sm:$0xff] %v485
        %488 = vst [vmem:[#allocation2 + $0x58] sm:$0xff] %v486
        %489 = vrot.lane.b32.xlu0 %v345, 113
        %v490 = vpop.permute.xlu0 %489
        %491 = vrot.lane.b32.xlu0 %v347, 113
        %v492 = vpop.permute.xlu0 %491
        %493 = vrot.lane.b32.xlu0 %v346, 113
        %v494 = vpop.permute.xlu0 %493
        %495 = vrot.lane.b32.xlu0 %v348, 113
        %v496 = vpop.permute.xlu0 %495
        %vm497 = vcmp.lt.s32.totalorder %v361, 113
        %v498 = vsel %vm497, %v490, %v494
        %v499 = vsel %vm497, %v492, %v496
        %v500 = vsel %vm497, %v494, %v490
        %v501 = vsel %vm497, %v496, %v492
        %v502 = vmul.f32 %v498, %v371
        %v503 = vmul.f32 %v500, %v375
        %v504 = vmul.f32 %v499, %v371
        %v505 = vmul.f32 %v501, %v375
        %v506 = vpack.c.bf16 %v504, %v502
        %v507 = vpack.c.bf16 %v505, %v503
        %508 = vst [vmem:[#allocation2 + $0x60] sm:$0xff] %v506
        %509 = vst [vmem:[#allocation2 + $0x68] sm:$0xff] %v507
        %510 = vrot.lane.b32.xlu0 %v345, 112
        %v511 = vpop.permute.xlu0 %510
        %512 = vrot.lane.b32.xlu0 %v347, 112
        %v513 = vpop.permute.xlu0 %512
        %514 = vrot.lane.b32.xlu0 %v346, 112
        %v515 = vpop.permute.xlu0 %514
        %516 = vrot.lane.b32.xlu0 %v348, 112
        %v517 = vpop.permute.xlu0 %516
        %vm518 = vcmp.lt.s32.totalorder %v361, 112
        %v519 = vsel %vm518, %v511, %v515
        %v520 = vsel %vm518, %v513, %v517
        %v521 = vsel %vm518, %v515, %v511
        %v522 = vsel %vm518, %v517, %v513
        %v523 = vpack.c.bf16 %v520, %v519
        %v524 = vpack.c.bf16 %v522, %v521
        %525 = vst [vmem:[#allocation2 + $0x70] sm:$0xff] %v523
        %526 = vst [vmem:[#allocation2 + $0x78] sm:$0xff] %v524
        %527 = vrot.lane.b32.xlu0 %v345, 111
        %v528 = vpop.permute.xlu0 %527
        %529 = vrot.lane.b32.xlu0 %v347, 111
        %v530 = vpop.permute.xlu0 %529
        %531 = vrot.lane.b32.xlu0 %v346, 111
        %v532 = vpop.permute.xlu0 %531
        %533 = vrot.lane.b32.xlu0 %v348, 111
        %v534 = vpop.permute.xlu0 %533
        %vm535 = vcmp.lt.s32.totalorder %v361, 111
        %v536 = vsel %vm535, %v528, %v532
        %v537 = vsel %vm535, %v530, %v534
        %v538 = vsel %vm535, %v532, %v528
        %v539 = vsel %vm535, %v534, %v530
        %v540 = vmul.f32 %v536, %v420
        %v541 = vmul.f32 %v538, %v424
        %v542 = vmul.f32 %v537, %v420
        %v543 = vmul.f32 %v539, %v424
        %v544 = vpack.c.bf16 %v542, %v540
        %v545 = vpack.c.bf16 %v543, %v541
        %546 = vst [vmem:[#allocation2 + $0x80] sm:$0xff] %v544
        %547 = vst [vmem:[#allocation2 + $0x88] sm:$0xff] %v545
        %v548 = vld [vmem:[%s2] sm:$0xff]
        %v549 = vld [vmem:[%s2 + $0x8] sm:$0xff]
        %v550 = vld [vmem:[#allocation2] sm:$0xff]
        %v551 = vld [vmem:[#allocation2 + $0x8] sm:$0xff]
        %v552 = vld [vmem:[#allocation2 + $0x10] sm:$0xff]
        %v553 = vld [vmem:[#allocation2 + $0x18] sm:$0xff]
        %v554 = vld [vmem:[#allocation2 + $0x20] sm:$0xff]
        %v555 = vld [vmem:[#allocation2 + $0x28] sm:$0xff]
        %v556 = vld [vmem:[#allocation2 + $0x30] sm:$0xff]
        %v557 = vld [vmem:[#allocation2 + $0x38] sm:$0xff]
        %v558 = vld [vmem:[#allocation2 + $0x40] sm:$0xff]
        %v559 = vld [vmem:[#allocation2 + $0x48] sm:$0xff]
        %v560 = vld [vmem:[#allocation2 + $0x50] sm:$0xff]
        %v561 = vld [vmem:[#allocation2 + $0x58] sm:$0xff]
        %v562 = vld [vmem:[#allocation2 + $0x60] sm:$0xff]
        %v563 = vld [vmem:[#allocation2 + $0x68] sm:$0xff]
        %v564 = vld [vmem:[#allocation2 + $0x70] sm:$0xff]
        %v565 = vld [vmem:[#allocation2 + $0x78] sm:$0xff]
        %v566 = vld [vmem:[#allocation2 + $0x80] sm:$0xff]
        %v567 = vld [vmem:[#allocation2 + $0x88] sm:$0xff]
        %v568 = vld [vmem:[%s3] sm:$0xff]
        %v569 = vld [vmem:[%s3 + $0x8] sm:$0xff]
        %571 = vset.pattern.permute.xlu0 0
        %572 = vperm.xlu0 %571, %v568
        %v573 = vpop.permute.xlu0 %572
        %576 = vset.pattern.permute.xlu0 0
        %577 = vperm.xlu0 %576, %v569
        %v578 = vpop.permute.xlu0 %577
        %v582 = vunpack.c.l.b16 %v548
        %v583 = vunpack.c.h.b16 %v548
        %v584 = vunpack.c.l.b16 %v549
        %v585 = vunpack.c.h.b16 %v549
        %v586 = vpack.c.b16 %v584, %v582
        %v587 = vpack.c.b16 %v585, %v583
        %vm589 = vcmask 130048
        %v591 = vsel %vm589, %v587, 0
        %593 = vmatprep.subr.bf16.mxu0 %v551
        %594 = vmatpush1.bf16.msra.mxu0 %v550
        %595 = vmatprep.subr.bf16.mxu0 %v553
        %596 = vmatpush1.bf16.msra.mxu0 %v552
        %597 = vmatprep.subr.bf16.mxu0 %v555
        %598 = vmatpush1.bf16.msra.mxu0 %v554
        %599 = vmatprep.subr.bf16.mxu0 %v557
        %600 = vmatpush1.bf16.msra.mxu0 %v556
        %601 = vmatprep.subr.bf16.mxu0 %v559
        %602 = vmatpush1.bf16.msra.mxu0 %v558
        %603 = vmatprep.subr.bf16.mxu0 %v561
        %604 = vmatpush1.bf16.msra.mxu0 %v560
        %605 = vmatprep.subr.bf16.mxu0 %v563
        %606 = vmatpush1.bf16.msra.mxu0 %v562
        %607 = vmatprep.subr.bf16.mxu0 %v565
        %608 = vmatpush1.bf16.msra.mxu0 %v564
        %609 = vmatprep.subr.bf16.mxu0 %v567
        %610 = vmatpush1.bf16.msra.mxu0 %v566
        %611 = vmatprep.subr.bf16.mxu0 0
        %612 = vmatpush1.bf16.msra.mxu0 0
        %613 = vmatprep.subr.bf16.mxu0 0
        %614 = vmatpush1.bf16.msra.mxu0 0
        %615 = vmatprep.subr.bf16.mxu0 0
        %616 = vmatpush1.bf16.msra.mxu0 0
        %617 = vmatprep.subr.bf16.mxu0 0
        %618 = vmatpush1.bf16.msra.mxu0 0
        %619 = vmatprep.subr.bf16.mxu0 0
        %620 = vmatpush1.bf16.msra.mxu0 0
        %621 = vmatprep.subr.bf16.mxu0 0
        %622 = vmatpush1.bf16.msra.mxu0 0
        %623 = vmatprep.subr.bf16.mxu0 0
        %624 = vmatpush1.bf16.msra.mxu0 0
        %625 = vmatprep.mubr.bf16.mxu0 %v591
        %626 = vmatmul.mubr.bf16.gmra.mrb[0].mxu0 %v586
        %v627 = vpop.f32.mrb[0].mxu0
        %v628 = vadd.f32 %v573, %v627
        %v629 = vpop.f32.mrb[0].mxu0
        %v630 = vadd.f32 %v573, %v629
        %v631 = vpop.f32.mrb[0].mxu0
        %v632 = vadd.f32 %v578, %v631
        %v633 = vpop.f32.mrb[0].mxu0
        %v634 = vadd.f32 %v578, %v633
        %635 = vdwg.mxu0
        %v636 = vmul.f32 %v628, 0.01
        %v637 = vmul.f32 %v630, 0.01
        %v638 = vmul.f32 %v632, 0.01
        %v639 = vmul.f32 %v634, 0.01
        %v640 = vmax.f32 %v628, %v636
        %v641 = vmax.f32 %v630, %v637
        %v642 = vmax.f32 %v632, %v638
        %v643 = vmax.f32 %v634, %v639
        %p644 = scmp.eq.s32.totalorder %s30, 0
        %s645 = scalar_lea.vmem %s0, 4
        %v646 = vld [vmem:[%s645] sm:$0x3]
        %s647 = scalar_select %p644, 1, 0
        %v648 = vstv %s647
        %vm649 = vcmp.eq.s32.totalorder %v648, 1
        %v650 = vsel %vm649, %v646, 1.0
        %p651 = scmp.eq.s32.totalorder %s30, 1
        %s652 = scalar_lea.vmem %s0, 6
        %v653 = vld [vmem:[%s652] sm:$0x3]
        %s654 = scalar_select %p651, 1, 0
        %v655 = vstv %s654
        %vm656 = vcmp.eq.s32.totalorder %v655, 1
        %v657 = vsel %vm656, %v653, 1.0
        %v658 = vmul.f32 %v650, %v657
        %v660 = vlaneseq
        %v661 = vshrl.u32 %v660, 7
        %v662 = vsub.s32 0, %v661
        %v663 = vrot.slane %v658, %v662
        %v664 = vlaneseq
        %v665 = vshrl.u32 %v664, 7
        %v666 = vsub.s32 1, %v665
        %v667 = vrot.slane %v658, %v666
        %v670 = vmul.f32 %v640, %v663
        %v671 = vmul.f32 %v641, %v667
        %v672 = vmul.f32 %v642, %v663
        %v673 = vmul.f32 %v643, %v667
        %674 = vrot.lane.b32.xlu0 %v670, 17
        %v675 = vpop.permute.xlu0 %674
        %676 = vrot.lane.b32.xlu0 %v672, 17
        %v677 = vpop.permute.xlu0 %676
        %678 = vrot.lane.b32.xlu0 %v671, 17
        %v679 = vpop.permute.xlu0 %678
        %680 = vrot.lane.b32.xlu0 %v673, 17
        %v681 = vpop.permute.xlu0 %680
        %v682 = vsel %vm362, %v675, %v679
        %v683 = vsel %vm362, %v677, %v681
        %v684 = vsel %vm362, %v679, %v675
        %v685 = vsel %vm362, %v681, %v677
        %v686 = vmul.f32 %v684, %v371
        %v687 = vmul.f32 %v682, %v375
        %v688 = vmul.f32 %v685, %v371
        %v689 = vmul.f32 %v683, %v375
        %v690 = vpack.c.bf16 %v688, %v686
        %v691 = vpack.c.bf16 %v689, %v687
        %692 = vst [vmem:[#allocation3] sm:$0xff] %v690
        %693 = vst [vmem:[#allocation3 + $0x8] sm:$0xff] %v691
        %694 = vrot.lane.b32.xlu0 %v670, 16
        %v695 = vpop.permute.xlu0 %694
        %696 = vrot.lane.b32.xlu0 %v672, 16
        %v697 = vpop.permute.xlu0 %696
        %698 = vrot.lane.b32.xlu0 %v671, 16
        %v699 = vpop.permute.xlu0 %698
        %700 = vrot.lane.b32.xlu0 %v673, 16
        %v701 = vpop.permute.xlu0 %700
        %v702 = vsel %vm394, %v695, %v699
        %v703 = vsel %vm394, %v697, %v701
        %v704 = vsel %vm394, %v699, %v695
        %v705 = vsel %vm394, %v701, %v697
        %v706 = vpack.c.bf16 %v705, %v704
        %v707 = vpack.c.bf16 %v703, %v702
        %708 = vst [vmem:[#allocation3 + $0x10] sm:$0xff] %v706
        %709 = vst [vmem:[#allocation3 + $0x18] sm:$0xff] %v707
        %710 = vrot.lane.b32.xlu0 %v670, 15
        %v711 = vpop.permute.xlu0 %710
        %712 = vrot.lane.b32.xlu0 %v672, 15
        %v713 = vpop.permute.xlu0 %712
        %714 = vrot.lane.b32.xlu0 %v671, 15
        %v715 = vpop.permute.xlu0 %714
        %716 = vrot.lane.b32.xlu0 %v673, 15
        %v717 = vpop.permute.xlu0 %716
        %v718 = vsel %vm411, %v711, %v715
        %v719 = vsel %vm411, %v713, %v717
        %v720 = vsel %vm411, %v715, %v711
        %v721 = vsel %vm411, %v717, %v713
        %v722 = vmul.f32 %v720, %v420
        %v723 = vmul.f32 %v718, %v424
        %v724 = vmul.f32 %v721, %v420
        %v725 = vmul.f32 %v719, %v424
        %v726 = vpack.c.bf16 %v724, %v722
        %v727 = vpack.c.bf16 %v725, %v723
        %728 = vst [vmem:[#allocation3 + $0x20] sm:$0xff] %v726
        %729 = vst [vmem:[#allocation3 + $0x28] sm:$0xff] %v727
        %730 = vrot.lane.b32.xlu0 %v670, 1
        %v731 = vpop.permute.xlu0 %730
        %732 = vrot.lane.b32.xlu0 %v672, 1
        %v733 = vpop.permute.xlu0 %732
        %734 = vrot.lane.b32.xlu0 %v671, 1
        %v735 = vpop.permute.xlu0 %734
        %736 = vrot.lane.b32.xlu0 %v673, 1
        %v737 = vpop.permute.xlu0 %736
        %v738 = vsel %vm443, %v731, %v735
        %v739 = vsel %vm443, %v733, %v737
        %v740 = vsel %vm443, %v735, %v731
        %v741 = vsel %vm443, %v737, %v733
        %v742 = vmul.f32 %v740, %v371
        %v743 = vmul.f32 %v738, %v375
        %v744 = vmul.f32 %v741, %v371
        %v745 = vmul.f32 %v739, %v375
        %v746 = vpack.c.bf16 %v744, %v742
        %v747 = vpack.c.bf16 %v745, %v743
        %748 = vst [vmem:[#allocation3 + $0x30] sm:$0xff] %v746
        %749 = vst [vmem:[#allocation3 + $0x38] sm:$0xff] %v747
        %v750 = vpack.c.bf16 %v672, %v670
        %v751 = vpack.c.bf16 %v673, %v671
        %752 = vst [vmem:[#allocation3 + $0x40] sm:$0xff] %v750
        %753 = vst [vmem:[#allocation3 + $0x48] sm:$0xff] %v751
        %754 = vrot.lane.b32.xlu0 %v670, 127
        %v755 = vpop.permute.xlu0 %754
        %756 = vrot.lane.b32.xlu0 %v672, 127
        %v757 = vpop.permute.xlu0 %756
        %758 = vrot.lane.b32.xlu0 %v671, 127
        %v759 = vpop.permute.xlu0 %758
        %760 = vrot.lane.b32.xlu0 %v673, 127
        %v761 = vpop.permute.xlu0 %760
        %v762 = vsel %vm476, %v755, %v759
        %v763 = vsel %vm476, %v757, %v761
        %v764 = vsel %vm476, %v759, %v755
        %v765 = vsel %vm476, %v761, %v757
        %v766 = vmul.f32 %v762, %v420
        %v767 = vmul.f32 %v764, %v424
        %v768 = vmul.f32 %v763, %v420
        %v769 = vmul.f32 %v765, %v424
        %v770 = vpack.c.bf16 %v768, %v766
        %v771 = vpack.c.bf16 %v769, %v767
        %772 = vst [vmem:[#allocation3 + $0x50] sm:$0xff] %v770
        %773 = vst [vmem:[#allocation3 + $0x58] sm:$0xff] %v771
        %774 = vrot.lane.b32.xlu0 %v670, 113
        %v775 = vpop.permute.xlu0 %774
        %776 = vrot.lane.b32.xlu0 %v672, 113
        %v777 = vpop.permute.xlu0 %776
        %778 = vrot.lane.b32.xlu0 %v671, 113
        %v779 = vpop.permute.xlu0 %778
        %780 = vrot.lane.b32.xlu0 %v673, 113
        %v781 = vpop.permute.xlu0 %780
        %v782 = vsel %vm497, %v775, %v779
        %v783 = vsel %vm497, %v777, %v781
        %v784 = vsel %vm497, %v779, %v775
        %v785 = vsel %vm497, %v781, %v777
        %v786 = vmul.f32 %v782, %v371
        %v787 = vmul.f32 %v784, %v375
        %v788 = vmul.f32 %v783, %v371
        %v789 = vmul.f32 %v785, %v375
        %v790 = vpack.c.bf16 %v788, %v786
        %v791 = vpack.c.bf16 %v789, %v787
        %792 = vst [vmem:[#allocation3 + $0x60] sm:$0xff] %v790
        %793 = vst [vmem:[#allocation3 + $0x68] sm:$0xff] %v791
        %794 = vrot.lane.b32.xlu0 %v670, 112
        %v795 = vpop.permute.xlu0 %794
        %796 = vrot.lane.b32.xlu0 %v672, 112
        %v797 = vpop.permute.xlu0 %796
        %798 = vrot.lane.b32.xlu0 %v671, 112
        %v799 = vpop.permute.xlu0 %798
        %800 = vrot.lane.b32.xlu0 %v673, 112
        %v801 = vpop.permute.xlu0 %800
        %v802 = vsel %vm518, %v795, %v799
        %v803 = vsel %vm518, %v797, %v801
        %v804 = vsel %vm518, %v799, %v795
        %v805 = vsel %vm518, %v801, %v797
        %v806 = vpack.c.bf16 %v803, %v802
        %v807 = vpack.c.bf16 %v805, %v804
        %808 = vst [vmem:[#allocation3 + $0x70] sm:$0xff] %v806
        %809 = vst [vmem:[#allocation3 + $0x78] sm:$0xff] %v807
        %810 = vrot.lane.b32.xlu0 %v670, 111
        %v811 = vpop.permute.xlu0 %810
        %812 = vrot.lane.b32.xlu0 %v672, 111
        %v813 = vpop.permute.xlu0 %812
        %814 = vrot.lane.b32.xlu0 %v671, 111
        %v815 = vpop.permute.xlu0 %814
        %816 = vrot.lane.b32.xlu0 %v673, 111
        %v817 = vpop.permute.xlu0 %816
        %v818 = vsel %vm535, %v811, %v815
        %v819 = vsel %vm535, %v813, %v817
        %v820 = vsel %vm535, %v815, %v811
        %v821 = vsel %vm535, %v817, %v813
        %v822 = vmul.f32 %v818, %v420
        %v823 = vmul.f32 %v820, %v424
        %v824 = vmul.f32 %v819, %v420
        %v825 = vmul.f32 %v821, %v424
        %v826 = vpack.c.bf16 %v824, %v822
        %v827 = vpack.c.bf16 %v825, %v823
        %828 = vst [vmem:[#allocation3 + $0x80] sm:$0xff] %v826
        %829 = vst [vmem:[#allocation3 + $0x88] sm:$0xff] %v827
        %v830 = vld [vmem:[%s4] sm:$0xff]
        %v831 = vld [vmem:[%s4 + $0x8] sm:$0xff]
        %v832 = vld [vmem:[#allocation3] sm:$0xff]
        %v833 = vld [vmem:[#allocation3 + $0x8] sm:$0xff]
        %v834 = vld [vmem:[#allocation3 + $0x10] sm:$0xff]
        %v835 = vld [vmem:[#allocation3 + $0x18] sm:$0xff]
        %v836 = vld [vmem:[#allocation3 + $0x20] sm:$0xff]
        %v837 = vld [vmem:[#allocation3 + $0x28] sm:$0xff]
        %v838 = vld [vmem:[#allocation3 + $0x30] sm:$0xff]
        %v839 = vld [vmem:[#allocation3 + $0x38] sm:$0xff]
        %v840 = vld [vmem:[#allocation3 + $0x40] sm:$0xff]
        %v841 = vld [vmem:[#allocation3 + $0x48] sm:$0xff]
        %v842 = vld [vmem:[#allocation3 + $0x50] sm:$0xff]
        %v843 = vld [vmem:[#allocation3 + $0x58] sm:$0xff]
        %v844 = vld [vmem:[#allocation3 + $0x60] sm:$0xff]
        %v845 = vld [vmem:[#allocation3 + $0x68] sm:$0xff]
        %v846 = vld [vmem:[#allocation3 + $0x70] sm:$0xff]
        %v847 = vld [vmem:[#allocation3 + $0x78] sm:$0xff]
        %v848 = vld [vmem:[#allocation3 + $0x80] sm:$0xff]
        %v849 = vld [vmem:[#allocation3 + $0x88] sm:$0xff]
        %v850 = vld [vmem:[%s5] sm:$0xff]
        %v851 = vld [vmem:[%s5 + $0x8] sm:$0xff]
        %853 = vset.pattern.permute.xlu0 0
        %854 = vperm.xlu0 %853, %v850
        %v855 = vpop.permute.xlu0 %854
        %858 = vset.pattern.permute.xlu0 0
        %859 = vperm.xlu0 %858, %v851
        %v860 = vpop.permute.xlu0 %859
        %v864 = vunpack.c.l.b16 %v830
        %v865 = vunpack.c.h.b16 %v830
        %v866 = vunpack.c.l.b16 %v831
        %v867 = vunpack.c.h.b16 %v831
        %v868 = vpack.c.b16 %v866, %v864
        %v869 = vpack.c.b16 %v867, %v865
        %v872 = vsel %vm589, %v869, 0
        %874 = vmatprep.subr.bf16.mxu0 %v833
        %875 = vmatpush1.bf16.msra.mxu0 %v832
        %876 = vmatprep.subr.bf16.mxu0 %v835
        %877 = vmatpush1.bf16.msra.mxu0 %v834
        %878 = vmatprep.subr.bf16.mxu0 %v837
        %879 = vmatpush1.bf16.msra.mxu0 %v836
        %880 = vmatprep.subr.bf16.mxu0 %v839
        %881 = vmatpush1.bf16.msra.mxu0 %v838
        %882 = vmatprep.subr.bf16.mxu0 %v841
        %883 = vmatpush1.bf16.msra.mxu0 %v840
        %884 = vmatprep.subr.bf16.mxu0 %v843
        %885 = vmatpush1.bf16.msra.mxu0 %v842
        %886 = vmatprep.subr.bf16.mxu0 %v845
        %887 = vmatpush1.bf16.msra.mxu0 %v844
        %888 = vmatprep.subr.bf16.mxu0 %v847
        %889 = vmatpush1.bf16.msra.mxu0 %v846
        %890 = vmatprep.subr.bf16.mxu0 %v849
        %891 = vmatpush1.bf16.msra.mxu0 %v848
        %892 = vmatprep.subr.bf16.mxu0 0
        %893 = vmatpush1.bf16.msra.mxu0 0
        %894 = vmatprep.subr.bf16.mxu0 0
        %895 = vmatpush1.bf16.msra.mxu0 0
        %896 = vmatprep.subr.bf16.mxu0 0
        %897 = vmatpush1.bf16.msra.mxu0 0
        %898 = vmatprep.subr.bf16.mxu0 0
        %899 = vmatpush1.bf16.msra.mxu0 0
        %900 = vmatprep.subr.bf16.mxu0 0
        %901 = vmatpush1.bf16.msra.mxu0 0
        %902 = vmatprep.subr.bf16.mxu0 0
        %903 = vmatpush1.bf16.msra.mxu0 0
        %904 = vmatprep.subr.bf16.mxu0 0
        %905 = vmatpush1.bf16.msra.mxu0 0
        %906 = vmatprep.mubr.bf16.mxu0 %v872
        %907 = vmatmul.mubr.bf16.gmra.mrb[0].mxu0 %v868
        %v908 = vpop.f32.mrb[0].mxu0
        %v909 = vadd.f32 %v855, %v908
        %v910 = vpop.f32.mrb[0].mxu0
        %v911 = vadd.f32 %v855, %v910
        %v912 = vpop.f32.mrb[0].mxu0
        %v913 = vadd.f32 %v860, %v912
        %v914 = vpop.f32.mrb[0].mxu0
        %v915 = vadd.f32 %v860, %v914
        %916 = vdwg.mxu0
        %v917 = vmul.f32 %v909, 0.01
        %v918 = vmul.f32 %v911, 0.01
        %v919 = vmul.f32 %v913, 0.01
        %v920 = vmul.f32 %v915, 0.01
        %v921 = vmax.f32 %v909, %v917
        %v922 = vmax.f32 %v911, %v918
        %v923 = vmax.f32 %v913, %v919
        %v924 = vmax.f32 %v915, %v920
        %v925 = vld [vmem:[%s6] sm:$0xf]
        %v926 = vld [vmem:[%s6 + $0x4] sm:$0xf]
        %v927 = vld [vmem:[%s7] sm:$0xff]
        %v928 = vld [vmem:[%s7 + $0x8] sm:$0xff]
        %930 = vset.pattern.permute.xlu0 0
        %931 = vperm.xlu0 %930, %v927
        %v932 = vpop.permute.xlu0 %931
        %935 = vset.pattern.permute.xlu0 0
        %936 = vperm.xlu0 %935, %v928
        %v937 = vpop.permute.xlu0 %936
        %v941 = vunpack.c.l.b16 %v925
        %v942 = vunpack.c.l.b16 %v926
        %v943 = vpack.c.b16 %v942, %v941
        %v945 = vsel %vm589, %v943, 0
        %947 = vmatprep.subr.bf16.mxu0 %v463
        %948 = vmatpush1.bf16.msra.mxu0 %v462
        %949 = vmatprep.subr.bf16.mxu0 0
        %950 = vmatpush1.bf16.msra.mxu0 0
        %951 = vmatprep.subr.bf16.mxu0 0
        %952 = vmatpush1.bf16.msra.mxu0 0
        %953 = vmatprep.subr.bf16.mxu0 0
        %954 = vmatpush1.bf16.msra.mxu0 0
        %955 = vmatprep.subr.bf16.mxu0 0
        %956 = vmatpush1.bf16.msra.mxu0 0
        %957 = vmatprep.subr.bf16.mxu0 0
        %958 = vmatpush1.bf16.msra.mxu0 0
        %959 = vmatprep.subr.bf16.mxu0 0
        %960 = vmatpush1.bf16.msra.mxu0 0
        %961 = vmatprep.subr.bf16.mxu0 0
        %962 = vmatpush1.bf16.msra.mxu0 0
        %963 = vmatprep.subr.bf16.mxu0 0
        %964 = vmatpush1.bf16.msra.mxu0 0
        %965 = vmatprep.subr.bf16.mxu0 0
        %966 = vmatpush1.bf16.msra.mxu0 0
        %967 = vmatprep.subr.bf16.mxu0 0
        %968 = vmatpush1.bf16.msra.mxu0 0
        %969 = vmatprep.subr.bf16.mxu0 0
        %970 = vmatpush1.bf16.msra.mxu0 0
        %971 = vmatprep.subr.bf16.mxu0 0
        %972 = vmatpush1.bf16.msra.mxu0 0
        %973 = vmatprep.subr.bf16.mxu0 0
        %974 = vmatpush1.bf16.msra.mxu0 0
        %975 = vmatprep.subr.bf16.mxu0 0
        %976 = vmatpush1.bf16.msra.mxu0 0
        %977 = vmatprep.subr.bf16.mxu0 0
        %978 = vmatpush1.bf16.msra.mxu0 0
        %979 = vmatprep.mubr.bf16.mxu0 0
        %980 = vmatmul.mubr.bf16.gmra.mrb[0].mxu0 %v945
        %v981 = vpop.f32.mrb[0].mxu0
        %v982 = vadd.f32 %v932, %v981
        %v983 = vpop.f32.mrb[0].mxu0
        %v984 = vadd.f32 %v932, %v983
        %v985 = vpop.f32.mrb[0].mxu0
        %v986 = vadd.f32 %v937, %v985
        %v987 = vpop.f32.mrb[0].mxu0
        %v988 = vadd.f32 %v937, %v987
        %989 = vdwg.mxu0
        %v990 = vadd.f32 %v921, %v982
        %v991 = vadd.f32 %v922, %v984
        %v992 = vadd.f32 %v923, %v986
        %v993 = vadd.f32 %v924, %v988
        %994 = vrot.lane.b32.xlu0 %v990, 96
        %v995 = vpop.permute.xlu0 %994
        %996 = vrot.lane.b32.xlu0 %v992, 96
        %v997 = vpop.permute.xlu0 %996
        %998 = vrot.lane.b32.xlu0 %v991, 96
        %v999 = vpop.permute.xlu0 %998
        %1000 = vrot.lane.b32.xlu0 %v993, 96
        %v1001 = vpop.permute.xlu0 %1000
        %vm1002 = vcmp.lt.s32.totalorder %v361, 96
        %v1003 = vsel %vm1002, %v995, %v999
        %v1004 = vsel %vm1002, %v997, %v1001
        %v1005 = vpack.c.bf16 %v1004, %v1003
        %v1007 = vunpack.c.l.b16 %v1005
        %v1008 = vunpack.c.h.b16 %v1005
        %v1009 = vpack.c.b16 %v1007, %v1007
        %v1010 = vpack.c.b16 %v1008, %v1008
        %1013 = vst [vmem:[%s341] sm:$0xf] %v1009
        %1014 = vst [vmem:[%s341 + $0x4] sm:$0xf] %v1010
        %s1015 = sand.u32 %s222, 1
        %s1016 = scalar_lea.sflag [#allocation6], %s1015
        %s1017 = sand.u32 %s222, 1
        %s1018 = smul.addr %s1017, 8
        %s1019 = scalar_lea.vmem [#allocation7], %s1018
        // Predicated region
        $region57: #{tpu_custom_call.1} parent=51 // pred_check
          %p1020 = pneg %p232
        $region58: #{tpu_custom_call.1} parent=51 // pred_check_branch
          %1022 = sbr.rel (%p1020) target = $region60
        $region59: #{tpu_custom_call.1} parent=51 // pred_region
          %s1024 = ssub.s32 128, 128
          %1025 = vsyncadd %s1016, %s1024
          %s1026 = smul.addr %s29, 4
          %s1027 = sadd.s32 %s30, %s1026
          %s1028 = smul.addr %s1027, 64
          %s1029 = scalar_lea.hbm %s8, %s1028
          %s1030 = sshll.u32 %s1019, 4
          %s1031 = int_to_ptr.vmem [resolvable:$true] %s1030
          %1036 = dma.vmem_to_hbm [thread:$0]  %s1031, 128, %s1029, %s1016, 64, 128, 4
        $region60: #{tpu_custom_call.1} parent=51 // pred_fallthru
          _
      $region52: #{tpu_custom_call.1} parent=5 // pred_fallthru
        _
      %p1037 = scmp.le.s32.totalorder 2, %s20
      // Predicated region
      $region61: #{tpu_custom_call.1} parent=5 // pred_check
        %p1038 = pneg %p1037
      $region62: #{tpu_custom_call.1} parent=5 // pred_check_branch
        %1040 = sbr.rel (%p1038) target = $region64
      $region63: #{tpu_custom_call.1} parent=5 // pred_region
        %s1041 = ssub.s32 %s20, 2
        // Predicated region
        $region65: #{tpu_custom_call.1} parent=63 // pred_check
          %p1042 = pneg %p238
        $region66: #{tpu_custom_call.1} parent=63 // pred_check_branch
          %1044 = sbr.rel (%p1042) target = $region68
        $region67: #{tpu_custom_call.1} parent=63 // pred_region
          %s1045 = sand.u32 %s223, 1
          %s1046 = scalar_lea.sflag [#allocation6], %s1045
          %s1047 = sand.u32 %s223, 1
          %s1048 = smul.addr %s1047, 8
          %s1049 = scalar_lea.vmem [#allocation7], %s1048
          %1050 = dma.done %s1046, 128
        $region68: #{tpu_custom_call.1} parent=63 // pred_fallthru
          _
      $region64: #{tpu_custom_call.1} parent=5 // pred_fallthru
        _
    $region6: #{tpu_custom_call.1} parent=1 // loop_footer
      %s24 = sadd.s32 1, %s20
    $region7: #{tpu_custom_call.1} parent=1 // loop_footer_branch
      %19 = sbr.rel target = $region3
    $region8: #{tpu_custom_call.1} parent=1 // loop_exit
      _
    %1051 = vsyncpa [#allocation5], 1
    %s1052 = scalar_lea.sflag [#allocation5], 1
    %1053 = vsyncpa %s1052, 1
    %1054 = vsyncpa [#allocation6], 1
    %s1055 = scalar_lea.sflag [#allocation6], 1
    %1056 = vsyncpa %s1055, 1

</llo_original>
